<compile_context>
chip_gen: v5e
topology: v5e:2x2
jax: 0.10.0
libtpu: 0.0.40
codegen_flags: <defaults>
</compile_context>

<pallas_src>
import functools

import jax
import jax.numpy as jnp
from jax.experimental import pallas as pl
from jax.experimental.pallas import tpu as pltpu

HID1 = 512   # feature1 hidden size
HID2 = 64    # feature2 hidden size (lane-padded to LANE inside the kernel path)
LANE = 128


def _round_up(n, m):
    return (n + m - 1) // m * m


def _mlp_kernel(xa_ref, w1_ref, w2_ref, b2_ref, w3_ref, b3_ref, o_ref, *, out_dim):
    # ---- feature1: label-selected Linear(in_dim, 512) + bias + ReLU as ONE matmul ----
    # The wrapper folded the class selection and per-class bias into xa / W1_aug.
    h1 = jnp.dot(xa_ref[...], w1_ref[...], preferred_element_type=jnp.float32)
    h1 = jnp.maximum(h1, 0.0).astype(jnp.bfloat16)              # (TB, 512)

    # ---- feature2: Linear(512, 64 -> lane-padded) + ReLU ----
    h2 = jnp.dot(h1, w2_ref[...], preferred_element_type=jnp.float32) + b2_ref[...]
    h2 = jnp.maximum(h2, 0.0).astype(jnp.bfloat16)              # (TB, 128)

    # ---- feature2: Linear(64, out_dim) -> lane-padded logits ----
    logits = jnp.dot(h2, w3_ref[...], preferred_element_type=jnp.float32) + b3_ref[...]

    # Stable softmax over the real classes only (mask the lane padding), f32.
    col = jax.lax.broadcasted_iota(jnp.int32, logits.shape, 1)
    logits = jnp.where(col < out_dim, logits, -jnp.inf)
    m = jnp.max(logits, axis=-1, keepdims=True)
    e = jnp.exp(logits - m)
    denom = jnp.sum(e, axis=-1, keepdims=True)
    probs = e * pl.reciprocal(denom, approx=True)
    o_ref[...] = probs.astype(o_ref.dtype)                      # lane-dense store


def mlp_forward(x, y, params, *, tb=128):
    """x: [B, in_dim] f32, y: [B] int labels in [0, class_num). Returns [B, out_dim] probs."""
    w1, b1, w2, b2, w3, b3 = params
    B, in_dim = x.shape
    class_num = w1.shape[0]
    hid2 = w2.shape[1]
    out_dim = w3.shape[1]

    k_raw = class_num * in_dim + class_num           # one-hot-expanded x + one-hot (bias) cols
    k_p = _round_up(max(k_raw, LANE), LANE)
    hid2_p = _round_up(max(hid2, LANE), LANE)
    out_p = _round_up(max(out_dim, LANE), LANE)
    b_p = _round_up(max(B, tb), tb)
    n_tiles = b_p // tb

    # Fold the data-dependent class selection into the input: scatter x into the
    # class block picked by its label, and append the one-hot itself (it selects
    # the per-class bias row stacked under W1).  Padded rows stay all-zero.
    onehot = jax.nn.one_hot(y, class_num, dtype=jnp.float32)                   # (B, C)
    x_exp = (onehot[:, :, None] * x[:, None, :]).reshape(B, class_num * in_dim)
    x_aug = jnp.concatenate([x_exp, onehot], axis=1)                           # (B, C*in+C)
    xa_p = jnp.zeros((b_p, k_p), jnp.bfloat16).at[:B, :k_raw].set(x_aug.astype(jnp.bfloat16))

    # Weights: bf16 for the MXU; zero-pad contraction / lane dims.
    w1_aug = jnp.concatenate([w1.reshape(class_num * in_dim, HID1), b1], axis=0)   # (C*in+C, 512)
    w1_p = jnp.zeros((k_p, HID1), jnp.bfloat16).at[:k_raw].set(w1_aug.astype(jnp.bfloat16))
    w2_b = jnp.zeros((HID1, hid2_p), jnp.bfloat16).at[:, :hid2].set(w2.astype(jnp.bfloat16))
    b2_r = jnp.zeros((1, hid2_p), jnp.float32).at[0, :hid2].set(b2.astype(jnp.float32))
    w3_b = jnp.zeros((hid2_p, out_p), jnp.bfloat16).at[:hid2, :out_dim].set(w3.astype(jnp.bfloat16))
    b3_r = jnp.zeros((1, out_p), jnp.float32).at[0, :out_dim].set(b3.astype(jnp.float32))

    kernel = functools.partial(_mlp_kernel, out_dim=out_dim)

    out = pl.pallas_call(
        kernel,
        out_shape=jax.ShapeDtypeStruct((b_p, out_p), jnp.float32),
        grid=(n_tiles,),
        in_specs=[
            pl.BlockSpec((tb, k_p), lambda i: (i, 0)),           # expanded x tile
            pl.BlockSpec((k_p, HID1), lambda i: (0, 0)),         # W1_aug (resident)
            pl.BlockSpec((HID1, hid2_p), lambda i: (0, 0)),      # W2 (resident)
            pl.BlockSpec((1, hid2_p), lambda i: (0, 0)),         # b2 (resident)
            pl.BlockSpec((hid2_p, out_p), lambda i: (0, 0)),     # W3 (resident)
            pl.BlockSpec((1, out_p), lambda i: (0, 0)),          # b3 (resident)
        ],
        out_specs=pl.BlockSpec((tb, out_p), lambda i: (i, 0)),   # lane-dense out
        compiler_params=pltpu.CompilerParams(
            dimension_semantics=("parallel",)),
    )(xa_p, w1_p, w2_b, b2_r, w3_b, b3_r)
    return out[:B, :out_dim]


def ref_forward(x, y, params):
    w1, b1, w2, b2, w3, b3 = params
    h1 = jnp.maximum(jnp.einsum("bi,bio->bo", x, w1[y]) + b1[y], 0.0)
    h2 = jnp.maximum(h1 @ w2 + b2, 0.0)
    logits = h2 @ w3 + b3
    return jax.nn.softmax(logits, axis=-1)


def init_params(key, in_dim, out_dim, class_num):
    ks = jax.random.split(key, 6)
    w1 = jax.random.normal(ks[0], (class_num, in_dim, HID1), jnp.float32) * 0.05
    b1 = jax.random.normal(ks[1], (class_num, HID1), jnp.float32) * 0.05
    w2 = jax.random.normal(ks[2], (HID1, HID2), jnp.float32) * 0.05
    b2 = jax.random.normal(ks[3], (HID2,), jnp.float32) * 0.05
    w3 = jax.random.normal(ks[4], (HID2, out_dim), jnp.float32) * 0.05
    b3 = jax.random.normal(ks[5], (out_dim,), jnp.float32) * 0.05
    return (w1, b1, w2, b2, w3, b3)


if __name__ == "__main__":
    in_dim, out_dim, class_num, batch = 32, 2, 10, 4

    key = jax.random.PRNGKey(0)
    pkey, xkey, ykey = jax.random.split(key, 3)
    params = init_params(pkey, in_dim, out_dim, class_num)

    x = jax.random.normal(xkey, (batch, in_dim), jnp.float32)
    y = jax.random.randint(ykey, (batch,), 0, class_num, dtype=jnp.int32)

    out = mlp_forward(x, y, params)
    out = jax.block_until_ready(out)

    ref = ref_forward(x, y, params)
    assert out.shape == (batch, out_dim), out.shape
    assert jnp.allclose(out, ref, atol=2e-2, rtol=2e-2), (out, ref)
    assert jnp.allclose(jnp.sum(out, axis=-1), 1.0, atol=1e-2)

    print("KERNEL_OK")
</pallas_src>

<mosaic_0001>
module attributes {stable_mosaic.version = 11 : i64} {
  func.func @_mlp_kernel(%arg0: i32, %arg1: memref<128x384xbf16, #tpu.memory_space<vmem>>, %arg2: memref<384x512xbf16, #tpu.memory_space<vmem>>, %arg3: memref<512x128xbf16, #tpu.memory_space<vmem>>, %arg4: memref<1x128xf32, #tpu.memory_space<vmem>>, %arg5: memref<128x128xbf16, #tpu.memory_space<vmem>>, %arg6: memref<1x128xf32, #tpu.memory_space<vmem>>, %arg7: memref<128x128xf32, #tpu.memory_space<vmem>>) attributes {dimension_semantics = [#tpu.dimension_semantics<parallel>], iteration_bounds = array<i64: 1>, scalar_prefetch = 0 : i64, scratch_operands = 0 : i64, tpu.core_type = #tpu.core_type<tc>, window_params = [{transform_indices = @transform_0, window_bounds = array<i64: 128, 384>}, {pipeline_mode = #tpu.pipeline_mode<synchronous>, transform_indices = @transform_1, window_bounds = array<i64: 384, 512>}, {pipeline_mode = #tpu.pipeline_mode<synchronous>, transform_indices = @transform_2, window_bounds = array<i64: 512, 128>}, {pipeline_mode = #tpu.pipeline_mode<synchronous>, transform_indices = @transform_3, window_bounds = array<i64: 1, 128>}, {pipeline_mode = #tpu.pipeline_mode<synchronous>, transform_indices = @transform_4, window_bounds = array<i64: 128, 128>}, {pipeline_mode = #tpu.pipeline_mode<synchronous>, transform_indices = @transform_5, window_bounds = array<i64: 1, 128>}, {transform_indices = @transform_6, window_bounds = array<i64: 128, 128>}]} {
    %c0 = arith.constant 0 : index
    %c0_0 = arith.constant 0 : index
    %0 = vector.load %arg1[%c0, %c0_0] : memref<128x384xbf16, #tpu.memory_space<vmem>>, vector<128x384xbf16>
    %c0_1 = arith.constant 0 : index
    %c0_2 = arith.constant 0 : index
    %1 = vector.load %arg2[%c0_1, %c0_2] : memref<384x512xbf16, #tpu.memory_space<vmem>>, vector<384x512xbf16>
    %cst = arith.constant dense<0.000000e+00> : vector<128x512xf32>
    %2 = tpu.matmul %0, %1, %cst {dimension_numbers = #tpu.dot_dimension_numbers<[1], [0], [0], [1], [0, 0, 1, 1], [], []>} : vector<128x384xbf16>, vector<384x512xbf16>, vector<128x512xf32> -> vector<128x512xf32>
    %cst_3 = arith.constant 0.000000e+00 : f32
    %3 = vector.broadcast %cst_3 : f32 to vector<128x512xf32>
    %4 = arith.maximumf %2, %3 : vector<128x512xf32>
    %5 = arith.truncf %4 : vector<128x512xf32> to vector<128x512xbf16>
    %c0_4 = arith.constant 0 : index
    %c0_5 = arith.constant 0 : index
    %6 = vector.load %arg3[%c0_4, %c0_5] : memref<512x128xbf16, #tpu.memory_space<vmem>>, vector<512x128xbf16>
    %cst_6 = arith.constant dense<0.000000e+00> : vector<128x128xf32>
    %7 = tpu.matmul %5, %6, %cst_6 {dimension_numbers = #tpu.dot_dimension_numbers<[1], [0], [0], [1], [0, 0, 1, 1], [], []>} : vector<128x512xbf16>, vector<512x128xbf16>, vector<128x128xf32> -> vector<128x128xf32>
    %c0_7 = arith.constant 0 : index
    %c0_8 = arith.constant 0 : index
    %8 = vector.load %arg4[%c0_7, %c0_8] : memref<1x128xf32, #tpu.memory_space<vmem>>, vector<1x128xf32>
    %9 = vector.broadcast %8 : vector<1x128xf32> to vector<128x128xf32>
    %10 = arith.addf %7, %9 : vector<128x128xf32>
    %cst_9 = arith.constant 0.000000e+00 : f32
    %11 = vector.broadcast %cst_9 : f32 to vector<128x128xf32>
    %12 = arith.maximumf %10, %11 : vector<128x128xf32>
    %13 = arith.truncf %12 : vector<128x128xf32> to vector<128x128xbf16>
    %c0_10 = arith.constant 0 : index
    %c0_11 = arith.constant 0 : index
    %14 = vector.load %arg5[%c0_10, %c0_11] : memref<128x128xbf16, #tpu.memory_space<vmem>>, vector<128x128xbf16>
    %cst_12 = arith.constant dense<0.000000e+00> : vector<128x128xf32>
    %15 = tpu.matmul %13, %14, %cst_12 {dimension_numbers = #tpu.dot_dimension_numbers<[1], [0], [0], [1], [0, 0, 1, 1], [], []>} : vector<128x128xbf16>, vector<128x128xbf16>, vector<128x128xf32> -> vector<128x128xf32>
    %c0_13 = arith.constant 0 : index
    %c0_14 = arith.constant 0 : index
    %16 = vector.load %arg6[%c0_13, %c0_14] : memref<1x128xf32, #tpu.memory_space<vmem>>, vector<1x128xf32>
    %17 = vector.broadcast %16 : vector<1x128xf32> to vector<128x128xf32>
    %18 = arith.addf %15, %17 : vector<128x128xf32>
    %19 = tpu.iota {dimensions = array<i32: 1>} : vector<128x128xi32>
    %c2_i32 = arith.constant 2 : i32
    %20 = vector.broadcast %c2_i32 : i32 to vector<128x128xi32>
    %21 = arith.cmpi slt, %19, %20 : vector<128x128xi32>
    %cst_15 = arith.constant 0xFF800000 : f32
    %22 = vector.broadcast %cst_15 : f32 to vector<128x128xf32>
    %23 = arith.select %21, %18, %22 : vector<128x128xi1>, vector<128x128xf32>
    %cst_16 = arith.constant dense<0xFF800000> : vector<128xf32>
    %24 = vector.multi_reduction <maximumf>, %23, %cst_16 [1] : vector<128x128xf32> to vector<128xf32>
    %25 = vector.shape_cast %24 : vector<128xf32> to vector<128x1xf32>
    %26 = vector.broadcast %25 : vector<128x1xf32> to vector<128x128xf32>
    %27 = arith.subf %23, %26 : vector<128x128xf32>
    %28 = math.exp %27 : vector<128x128xf32>
    %cst_17 = arith.constant dense<0.000000e+00> : vector<128xf32>
    %29 = vector.multi_reduction <add>, %28, %cst_17 [1] : vector<128x128xf32> to vector<128xf32>
    %30 = vector.shape_cast %29 : vector<128xf32> to vector<128x1xf32>
    %31 = tpu.reciprocal %30 {approx = true} : vector<128x1xf32> -> vector<128x1xf32>
    %32 = vector.broadcast %31 : vector<128x1xf32> to vector<128x128xf32>
    %33 = arith.mulf %28, %32 : vector<128x128xf32>
    %c0_18 = arith.constant 0 : index
    %c0_19 = arith.constant 0 : index
    %34 = vector.load %arg7[%c0_18, %c0_19] : memref<128x128xf32, #tpu.memory_space<vmem>>, vector<128x128xf32>
    tpu.vector_store %arg7[%c0_18, %c0_19], %33 {strides = array<i32>} : memref<128x128xf32, #tpu.memory_space<vmem>>, vector<128x128xf32>,
    return
  }
  func.func @transform_0(%arg0: i32) -> (i32, i32) {
    %c0_i32 = arith.constant 0 : i32
    %c0_i32_0 = arith.constant 0 : i32
    return %arg0, %c0_i32 : i32, i32
  }
  func.func @transform_1(%arg0: i32) -> (i32, i32) {
    %c0_i32 = arith.constant 0 : i32
    %c0_i32_0 = arith.constant 0 : i32
    %c0_i32_1 = arith.constant 0 : i32
    return %c0_i32, %c0_i32_0 : i32, i32
  }
  func.func @transform_2(%arg0: i32) -> (i32, i32) {
    %c0_i32 = arith.constant 0 : i32
    %c0_i32_0 = arith.constant 0 : i32
    %c0_i32_1 = arith.constant 0 : i32
    return %c0_i32, %c0_i32_0 : i32, i32
  }
  func.func @transform_3(%arg0: i32) -> (i32, i32) {
    %c0_i32 = arith.constant 0 : i32
    %c0_i32_0 = arith.constant 0 : i32
    %c0_i32_1 = arith.constant 0 : i32
    return %c0_i32, %c0_i32_0 : i32, i32
  }
  func.func @transform_4(%arg0: i32) -> (i32, i32) {
    %c0_i32 = arith.constant 0 : i32
    %c0_i32_0 = arith.constant 0 : i32
    %c0_i32_1 = arith.constant 0 : i32
    return %c0_i32, %c0_i32_0 : i32, i32
  }
  func.func @transform_5(%arg0: i32) -> (i32, i32) {
    %c0_i32 = arith.constant 0 : i32
    %c0_i32_0 = arith.constant 0 : i32
    %c0_i32_1 = arith.constant 0 : i32
    return %c0_i32, %c0_i32_0 : i32, i32
  }
  func.func @transform_6(%arg0: i32) -> (i32, i32) {
    %c0_i32 = arith.constant 0 : i32
    %c0_i32_0 = arith.constant 0 : i32
    return %arg0, %c0_i32 : i32, i32
  }
}

</mosaic_0001>

<llo_original>
// kernel: tpu_custom_call.1
$region0: #{tpu_custom_call.1}
  #allocation0 [shape = 'u32[]', space=smem, size = 0x4, offset = 0x4, fixed_abs, tag = 'smem constant byte address 0x4 - core index']
  #allocation1 [shape = 'u32[72,128]{1,0:T(1,128)}', space=vmem, size = 0x9000, scoped, tag = 'internal scratch']
  %s0 = inlined_call_operand.hbm [shape: bf16[128,384], index: 0, kind: input, shape index: {}]
  %s1 = inlined_call_operand.hbm [shape: bf16[384,512], index: 1, kind: input, shape index: {}]
  %s2 = inlined_call_operand.hbm [shape: bf16[512,128], index: 2, kind: input, shape index: {}]
  %s3 = inlined_call_operand.vmem [shape: f32[1,128], index: 3, kind: input, shape index: {}]
  %s4 = inlined_call_operand.hbm [shape: bf16[128,128], index: 4, kind: input, shape index: {}]
  %s5 = inlined_call_operand.vmem [shape: f32[1,128], index: 5, kind: input, shape index: {}]
  %s6 = inlined_call_operand.hbm [shape: f32[128,128], index: 6, kind: output, shape index: {}]
  %s7 = sld [smem:[#allocation0]]
  $region50: #{tpu_custom_call.1} parent=0
    _
  %s9 = ssub.s32 1, %s7
  %s10 = scalar_select 0, %s9, %s7
  $region1: #{tpu_custom_call.1} parent=0
    #allocation2 [shape = 'u8[98304]{0}', space=vmem, size = 0x18000, scoped, tag = 'input window, operand 0, single buffered']
    #allocation3 [shape = 's32[1]{0}', space=sflag, size = 0x4, scoped, tag = 'scoped memory for tpu_custom_call.1']
    #allocation4 [shape = 's32[1]{0}', space=sflag, size = 0x4, scoped, tag = 'scoped memory for tpu_custom_call.1']
    #allocation5 [shape = 'u8[393216]{0}', space=vmem, size = 0x60000, scoped, tag = 'input window, operand 1, single buffered']
    #allocation6 [shape = 's32[1]{0}', space=sflag, size = 0x4, scoped, tag = 'scoped memory for tpu_custom_call.1']
    #allocation7 [shape = 'u8[131072]{0}', space=vmem, size = 0x20000, scoped, tag = 'input window, operand 2, single buffered']
    #allocation8 [shape = 'u8[32768]{0}', space=vmem, size = 0x8000, scoped, tag = 'input window, operand 4, single buffered']
    #allocation9 [shape = 's32[1]{0}', space=sflag, size = 0x4, scoped, tag = 'scoped memory for tpu_custom_call.1']
    #allocation10 [shape = 'u8[65536]{0}', space=vmem, size = 0x10000, scoped, tag = 'output window, operand 0, single buffered']
    %11 = vsyncpa [#allocation3], 0
    %12 = vsyncpa [#allocation6], 0
    %13 = vsyncpa [#allocation9], 0
    %14 = vsyncpa [#allocation4], 0
    // Predicated region
    $region2: #{tpu_custom_call.1} parent=1 // pred_check
      _
    $region3: #{tpu_custom_call.1} parent=1 // pred_check_branch
      %16 = sbr.rel (0) target = $region5
    $region4: #{tpu_custom_call.1} parent=1 // pred_region
      %18 = vsyncadd [#allocation3], 0
      %s19 = sshll.u32 %s0, 4
      %s20 = int_to_ptr.hbm [resolvable:$true] %s19
      %s21 = sshll.u32 [#allocation2], 4
      %s22 = int_to_ptr.vmem [resolvable:$true] %s21
      %27 = dma.hbm_to_vmem [thread:$0]  %s20, 3072, %s22, [#allocation3], 192, 192, 12
    $region5: #{tpu_custom_call.1} parent=1 // pred_fallthru
      _
    // Predicated region
    $region6: #{tpu_custom_call.1} parent=1 // pred_check
      _
    $region7: #{tpu_custom_call.1} parent=1 // pred_check_branch
      %29 = sbr.rel (0) target = $region9
    $region8: #{tpu_custom_call.1} parent=1 // pred_region
      %31 = vsyncadd [#allocation6], 0
      %s32 = sshll.u32 %s1, 4
      %s33 = int_to_ptr.hbm [resolvable:$true] %s32
      %s34 = sshll.u32 [#allocation5], 4
      %s35 = int_to_ptr.vmem [resolvable:$true] %s34
      %40 = dma.hbm_to_vmem [thread:$0]  %s33, 12288, %s35, [#allocation6], 256, 256, 16
    $region9: #{tpu_custom_call.1} parent=1 // pred_fallthru
      _
    // Predicated region
    $region10: #{tpu_custom_call.1} parent=1 // pred_check
      _
    $region11: #{tpu_custom_call.1} parent=1 // pred_check_branch
      %42 = sbr.rel (0) target = $region13
    $region12: #{tpu_custom_call.1} parent=1 // pred_region
      %44 = vsyncadd [#allocation6], 0
      %s45 = sshll.u32 %s2, 4
      %s46 = int_to_ptr.hbm [resolvable:$true] %s45
      %s47 = sshll.u32 [#allocation7], 4
      %s48 = int_to_ptr.vmem [resolvable:$true] %s47
      %53 = dma.hbm_to_vmem [thread:$0]  %s46, 4096, %s48, [#allocation6], 64, 64, 4
    $region13: #{tpu_custom_call.1} parent=1 // pred_fallthru
      _
    // Predicated region
    $region14: #{tpu_custom_call.1} parent=1 // pred_check
      _
    $region15: #{tpu_custom_call.1} parent=1 // pred_check_branch
      %55 = sbr.rel (0) target = $region17
    $region16: #{tpu_custom_call.1} parent=1 // pred_region
      _
    $region17: #{tpu_custom_call.1} parent=1 // pred_fallthru
      _
    // Predicated region
    $region18: #{tpu_custom_call.1} parent=1 // pred_check
      _
    $region19: #{tpu_custom_call.1} parent=1 // pred_check_branch
      %57 = sbr.rel (0) target = $region21
    $region20: #{tpu_custom_call.1} parent=1 // pred_region
      %59 = vsyncadd [#allocation9], 0
      %s60 = sshll.u32 %s4, 4
      %s61 = int_to_ptr.hbm [resolvable:$true] %s60
      %s62 = sshll.u32 [#allocation8], 4
      %s63 = int_to_ptr.vmem [resolvable:$true] %s62
      %68 = dma.hbm_to_vmem [thread:$0]  %s61, 1024, %s63, [#allocation9], 64, 64, 4
    $region21: #{tpu_custom_call.1} parent=1 // pred_fallthru
      _
    // Predicated region
    $region22: #{tpu_custom_call.1} parent=1 // pred_check
      _
    $region23: #{tpu_custom_call.1} parent=1 // pred_check_branch
      %70 = sbr.rel (0) target = $region25
    $region24: #{tpu_custom_call.1} parent=1 // pred_region
      _
    $region25: #{tpu_custom_call.1} parent=1 // pred_fallthru
      _
    // Predicated region
    $region26: #{tpu_custom_call.1} parent=1 // pred_check
      _
    $region27: #{tpu_custom_call.1} parent=1 // pred_check_branch
      %72 = sbr.rel (0) target = $region29
    $region28: #{tpu_custom_call.1} parent=1 // pred_region
      %74 = dma.done [#allocation3], 3072
    $region29: #{tpu_custom_call.1} parent=1 // pred_fallthru
      _
    // Predicated region
    $region30: #{tpu_custom_call.1} parent=1 // pred_check
      _
    $region31: #{tpu_custom_call.1} parent=1 // pred_check_branch
      %76 = sbr.rel (0) target = $region33
    $region32: #{tpu_custom_call.1} parent=1 // pred_region
      %78 = dma.done [#allocation6], 12288
    $region33: #{tpu_custom_call.1} parent=1 // pred_fallthru
      _
    // Predicated region
    $region34: #{tpu_custom_call.1} parent=1 // pred_check
      _
    $region35: #{tpu_custom_call.1} parent=1 // pred_check_branch
      %80 = sbr.rel (0) target = $region37
    $region36: #{tpu_custom_call.1} parent=1 // pred_region
      %82 = dma.done [#allocation6], 4096
    $region37: #{tpu_custom_call.1} parent=1 // pred_fallthru
      _
    // Predicated region
    $region38: #{tpu_custom_call.1} parent=1 // pred_check
      _
    $region39: #{tpu_custom_call.1} parent=1 // pred_check_branch
      %84 = sbr.rel (0) target = $region41
    $region40: #{tpu_custom_call.1} parent=1 // pred_region
      %86 = dma.done [#allocation9], 1024
    $region41: #{tpu_custom_call.1} parent=1 // pred_fallthru
      _
    %v87 = vld [vmem:[#allocation2] sm:$0xff]
    %v88 = vld [vmem:[#allocation2 + $0x8] sm:$0xf]
    %v89 = vld [vmem:[#allocation2 + $0xc] sm:$0xff]
    %v90 = vld [vmem:[#allocation2 + $0x14] sm:$0xf]
    %v91 = vld [vmem:[#allocation2 + $0x18] sm:$0xff]
    %v92 = vld [vmem:[#allocation2 + $0x20] sm:$0xf]
    %v93 = vld [vmem:[#allocation2 + $0x24] sm:$0xff]
    %v94 = vld [vmem:[#allocation2 + $0x2c] sm:$0xf]
    %v95 = vld [vmem:[#allocation2 + $0x30] sm:$0xff]
    %v96 = vld [vmem:[#allocation2 + $0x38] sm:$0xf]
    %v97 = vld [vmem:[#allocation2 + $0x3c] sm:$0xff]
    %v98 = vld [vmem:[#allocation2 + $0x44] sm:$0xf]
    %v99 = vld [vmem:[#allocation2 + $0x48] sm:$0xff]
    %v100 = vld [vmem:[#allocation2 + $0x50] sm:$0xf]
    %v101 = vld [vmem:[#allocation2 + $0x54] sm:$0xff]
    %v102 = vld [vmem:[#allocation2 + $0x5c] sm:$0xf]
    %v103 = vld [vmem:[#allocation2 + $0x60] sm:$0xff]
    %v104 = vld [vmem:[#allocation2 + $0x68] sm:$0xf]
    %v105 = vld [vmem:[#allocation2 + $0x6c] sm:$0xff]
    %v106 = vld [vmem:[#allocation2 + $0x74] sm:$0xf]
    %v107 = vld [vmem:[#allocation2 + $0x78] sm:$0xff]
    %v108 = vld [vmem:[#allocation2 + $0x80] sm:$0xf]
    %v109 = vld [vmem:[#allocation2 + $0x84] sm:$0xff]
    %v110 = vld [vmem:[#allocation2 + $0x8c] sm:$0xf]
    %v111 = vld [vmem:[#allocation2 + $0x90] sm:$0xff]
    %v112 = vld [vmem:[#allocation2 + $0x98] sm:$0xf]
    %v113 = vld [vmem:[#allocation2 + $0x9c] sm:$0xff]
    %v114 = vld [vmem:[#allocation2 + $0xa4] sm:$0xf]
    %v115 = vld [vmem:[#allocation2 + $0xa8] sm:$0xff]
    %v116 = vld [vmem:[#allocation2 + $0xb0] sm:$0xf]
    %v117 = vld [vmem:[#allocation2 + $0xb4] sm:$0xff]
    %v118 = vld [vmem:[#allocation2 + $0xbc] sm:$0xf]
    %v119 = vld [vmem:[#allocation5] sm:$0xff]
    %v120 = vld [vmem:[#allocation5 + $0x8] sm:$0xff]
    %v121 = vld [vmem:[#allocation5 + $0x10] sm:$0xff]
    %v122 = vld [vmem:[#allocation5 + $0x18] sm:$0xff]
    %v123 = vld [vmem:[#allocation5 + $0x20] sm:$0xff]
    %v124 = vld [vmem:[#allocation5 + $0x28] sm:$0xff]
    %v125 = vld [vmem:[#allocation5 + $0x30] sm:$0xff]
    %v126 = vld [vmem:[#allocation5 + $0x38] sm:$0xff]
    %v127 = vld [vmem:[#allocation5 + $0x40] sm:$0xff]
    %v128 = vld [vmem:[#allocation5 + $0x48] sm:$0xff]
    %v129 = vld [vmem:[#allocation5 + $0x50] sm:$0xff]
    %v130 = vld [vmem:[#allocation5 + $0x58] sm:$0xff]
    %v131 = vld [vmem:[#allocation5 + $0x60] sm:$0xff]
    %v132 = vld [vmem:[#allocation5 + $0x68] sm:$0xff]
    %v133 = vld [vmem:[#allocation5 + $0x70] sm:$0xff]
    %v134 = vld [vmem:[#allocation5 + $0x78] sm:$0xff]
    %v135 = vld [vmem:[#allocation5 + $0x80] sm:$0xff]
    %v136 = vld [vmem:[#allocation5 + $0x88] sm:$0xff]
    %v137 = vld [vmem:[#allocation5 + $0x90] sm:$0xff]
    %v138 = vld [vmem:[#allocation5 + $0x98] sm:$0xff]
    %v139 = vld [vmem:[#allocation5 + $0xa0] sm:$0xff]
    %v140 = vld [vmem:[#allocation5 + $0xa8] sm:$0xff]
    %v141 = vld [vmem:[#allocation5 + $0xb0] sm:$0xff]
    %v142 = vld [vmem:[#allocation5 + $0xb8] sm:$0xff]
    %v143 = vld [vmem:[#allocation5 + $0xc0] sm:$0xff]
    %v144 = vld [vmem:[#allocation5 + $0xc8] sm:$0xff]
    %v145 = vld [vmem:[#allocation5 + $0xd0] sm:$0xff]
    %v146 = vld [vmem:[#allocation5 + $0xd8] sm:$0xff]
    %v147 = vld [vmem:[#allocation5 + $0xe0] sm:$0xff]
    %v148 = vld [vmem:[#allocation5 + $0xe8] sm:$0xff]
    %v149 = vld [vmem:[#allocation5 + $0xf0] sm:$0xff]
    %v150 = vld [vmem:[#allocation5 + $0xf8] sm:$0xff]
    %v151 = vld [vmem:[#allocation5 + $0x100] sm:$0xff]
    %v152 = vld [vmem:[#allocation5 + $0x108] sm:$0xff]
    %v153 = vld [vmem:[#allocation5 + $0x110] sm:$0xff]
    %v154 = vld [vmem:[#allocation5 + $0x118] sm:$0xff]
    %v155 = vld [vmem:[#allocation5 + $0x120] sm:$0xff]
    %v156 = vld [vmem:[#allocation5 + $0x128] sm:$0xff]
    %v157 = vld [vmem:[#allocation5 + $0x130] sm:$0xff]
    %v158 = vld [vmem:[#allocation5 + $0x138] sm:$0xff]
    %v159 = vld [vmem:[#allocation5 + $0x140] sm:$0xff]
    %v160 = vld [vmem:[#allocation5 + $0x148] sm:$0xff]
    %v161 = vld [vmem:[#allocation5 + $0x150] sm:$0xff]
    %v162 = vld [vmem:[#allocation5 + $0x158] sm:$0xff]
    %v163 = vld [vmem:[#allocation5 + $0x160] sm:$0xff]
    %v164 = vld [vmem:[#allocation5 + $0x168] sm:$0xff]
    %v165 = vld [vmem:[#allocation5 + $0x170] sm:$0xff]
    %v166 = vld [vmem:[#allocation5 + $0x178] sm:$0xff]
    %v167 = vld [vmem:[#allocation5 + $0x180] sm:$0xff]
    %v168 = vld [vmem:[#allocation5 + $0x188] sm:$0xff]
    %v169 = vld [vmem:[#allocation5 + $0x190] sm:$0xff]
    %v170 = vld [vmem:[#allocation5 + $0x198] sm:$0xff]
    %v171 = vld [vmem:[#allocation5 + $0x1a0] sm:$0xff]
    %v172 = vld [vmem:[#allocation5 + $0x1a8] sm:$0xff]
    %v173 = vld [vmem:[#allocation5 + $0x1b0] sm:$0xff]
    %v174 = vld [vmem:[#allocation5 + $0x1b8] sm:$0xff]
    %v175 = vld [vmem:[#allocation5 + $0x1c0] sm:$0xff]
    %v176 = vld [vmem:[#allocation5 + $0x1c8] sm:$0xff]
    %v177 = vld [vmem:[#allocation5 + $0x1d0] sm:$0xff]
    %v178 = vld [vmem:[#allocation5 + $0x1d8] sm:$0xff]
    %v179 = vld [vmem:[#allocation5 + $0x1e0] sm:$0xff]
    %v180 = vld [vmem:[#allocation5 + $0x1e8] sm:$0xff]
    %v181 = vld [vmem:[#allocation5 + $0x1f0] sm:$0xff]
    %v182 = vld [vmem:[#allocation5 + $0x1f8] sm:$0xff]
    %v183 = vld [vmem:[#allocation5 + $0x200] sm:$0xff]
    %v184 = vld [vmem:[#allocation5 + $0x208] sm:$0xff]
    %v185 = vld [vmem:[#allocation5 + $0x210] sm:$0xff]
    %v186 = vld [vmem:[#allocation5 + $0x218] sm:$0xff]
    %v187 = vld [vmem:[#allocation5 + $0x220] sm:$0xff]
    %v188 = vld [vmem:[#allocation5 + $0x228] sm:$0xff]
    %v189 = vld [vmem:[#allocation5 + $0x230] sm:$0xff]
    %v190 = vld [vmem:[#allocation5 + $0x238] sm:$0xff]
    %v191 = vld [vmem:[#allocation5 + $0x240] sm:$0xff]
    %v192 = vld [vmem:[#allocation5 + $0x248] sm:$0xff]
    %v193 = vld [vmem:[#allocation5 + $0x250] sm:$0xff]
    %v194 = vld [vmem:[#allocation5 + $0x258] sm:$0xff]
    %v195 = vld [vmem:[#allocation5 + $0x260] sm:$0xff]
    %v196 = vld [vmem:[#allocation5 + $0x268] sm:$0xff]
    %v197 = vld [vmem:[#allocation5 + $0x270] sm:$0xff]
    %v198 = vld [vmem:[#allocation5 + $0x278] sm:$0xff]
    %v199 = vld [vmem:[#allocation5 + $0x280] sm:$0xff]
    %v200 = vld [vmem:[#allocation5 + $0x288] sm:$0xff]
    %v201 = vld [vmem:[#allocation5 + $0x290] sm:$0xff]
    %v202 = vld [vmem:[#allocation5 + $0x298] sm:$0xff]
    %v203 = vld [vmem:[#allocation5 + $0x2a0] sm:$0xff]
    %v204 = vld [vmem:[#allocation5 + $0x2a8] sm:$0xff]
    %v205 = vld [vmem:[#allocation5 + $0x2b0] sm:$0xff]
    %v206 = vld [vmem:[#allocation5 + $0x2b8] sm:$0xff]
    %v207 = vld [vmem:[#allocation5 + $0x2c0] sm:$0xff]
    %v208 = vld [vmem:[#allocation5 + $0x2c8] sm:$0xff]
    %v209 = vld [vmem:[#allocation5 + $0x2d0] sm:$0xff]
    %v210 = vld [vmem:[#allocation5 + $0x2d8] sm:$0xff]
    %v211 = vld [vmem:[#allocation5 + $0x2e0] sm:$0xff]
    %v212 = vld [vmem:[#allocation5 + $0x2e8] sm:$0xff]
    %v213 = vld [vmem:[#allocation5 + $0x2f0] sm:$0xff]
    %v214 = vld [vmem:[#allocation5 + $0x2f8] sm:$0xff]
    %v247 = vunpack.c.l.b16 %v87
    %v248 = vunpack.c.h.b16 %v87
    %v249 = vunpack.c.l.b16 %v88
    %v250 = vunpack.c.l.b16 %v89
    %v251 = vunpack.c.h.b16 %v89
    %v252 = vunpack.c.l.b16 %v90
    %v253 = vunpack.c.l.b16 %v91
    %v254 = vunpack.c.h.b16 %v91
    %v255 = vunpack.c.l.b16 %v92
    %v256 = vunpack.c.l.b16 %v93
    %v257 = vunpack.c.h.b16 %v93
    %v258 = vunpack.c.l.b16 %v94
    %v259 = vunpack.c.l.b16 %v95
    %v260 = vunpack.c.h.b16 %v95
    %v261 = vunpack.c.l.b16 %v96
    %v262 = vunpack.c.l.b16 %v97
    %v263 = vunpack.c.h.b16 %v97
    %v264 = vunpack.c.l.b16 %v98
    %v265 = vunpack.c.l.b16 %v99
    %v266 = vunpack.c.h.b16 %v99
    %v267 = vunpack.c.l.b16 %v100
    %v268 = vunpack.c.l.b16 %v101
    %v269 = vunpack.c.h.b16 %v101
    %v270 = vunpack.c.l.b16 %v102
    %v271 = vunpack.c.l.b16 %v103
    %v272 = vunpack.c.h.b16 %v103
    %v273 = vunpack.c.l.b16 %v104
    %v274 = vunpack.c.l.b16 %v105
    %v275 = vunpack.c.h.b16 %v105
    %v276 = vunpack.c.l.b16 %v106
    %v277 = vunpack.c.l.b16 %v107
    %v278 = vunpack.c.h.b16 %v107
    %v279 = vunpack.c.l.b16 %v108
    %v280 = vunpack.c.l.b16 %v109
    %v281 = vunpack.c.h.b16 %v109
    %v282 = vunpack.c.l.b16 %v110
    %v283 = vunpack.c.l.b16 %v111
    %v284 = vunpack.c.h.b16 %v111
    %v285 = vunpack.c.l.b16 %v112
    %v286 = vunpack.c.l.b16 %v113
    %v287 = vunpack.c.h.b16 %v113
    %v288 = vunpack.c.l.b16 %v114
    %v289 = vunpack.c.l.b16 %v115
    %v290 = vunpack.c.h.b16 %v115
    %v291 = vunpack.c.l.b16 %v116
    %v292 = vunpack.c.l.b16 %v117
    %v293 = vunpack.c.h.b16 %v117
    %v294 = vunpack.c.l.b16 %v118
    %v295 = vpack.c.b16 %v250, %v247
    %v296 = vpack.c.b16 %v251, %v248
    %v297 = vpack.c.b16 %v252, %v249
    %v298 = vpack.c.b16 %v256, %v253
    %v299 = vpack.c.b16 %v257, %v254
    %v300 = vpack.c.b16 %v258, %v255
    %v301 = vpack.c.b16 %v262, %v259
    %v302 = vpack.c.b16 %v263, %v260
    %v303 = vpack.c.b16 %v264, %v261
    %v304 = vpack.c.b16 %v268, %v265
    %v305 = vpack.c.b16 %v269, %v266
    %v306 = vpack.c.b16 %v270, %v267
    %v307 = vpack.c.b16 %v274, %v271
    %v308 = vpack.c.b16 %v275, %v272
    %v309 = vpack.c.b16 %v276, %v273
    %v310 = vpack.c.b16 %v280, %v277
    %v311 = vpack.c.b16 %v281, %v278
    %v312 = vpack.c.b16 %v282, %v279
    %v313 = vpack.c.b16 %v286, %v283
    %v314 = vpack.c.b16 %v287, %v284
    %v315 = vpack.c.b16 %v288, %v285
    %v316 = vpack.c.b16 %v292, %v289
    %v317 = vpack.c.b16 %v293, %v290
    %v318 = vpack.c.b16 %v294, %v291
    %v439 = vunpack.c.l.b16 %v119
    %v440 = vunpack.c.h.b16 %v119
    %v441 = vunpack.c.l.b16 %v120
    %v442 = vunpack.c.h.b16 %v120
    %v443 = vunpack.c.l.b16 %v121
    %v444 = vunpack.c.h.b16 %v121
    %v445 = vunpack.c.l.b16 %v122
    %v446 = vunpack.c.h.b16 %v122
    %v447 = vunpack.c.l.b16 %v123
    %v448 = vunpack.c.h.b16 %v123
    %v449 = vunpack.c.l.b16 %v124
    %v450 = vunpack.c.h.b16 %v124
    %v451 = vunpack.c.l.b16 %v125
    %v452 = vunpack.c.h.b16 %v125
    %v453 = vunpack.c.l.b16 %v126
    %v454 = vunpack.c.h.b16 %v126
    %v455 = vunpack.c.l.b16 %v127
    %v456 = vunpack.c.h.b16 %v127
    %v457 = vunpack.c.l.b16 %v128
    %v458 = vunpack.c.h.b16 %v128
    %v459 = vunpack.c.l.b16 %v129
    %v460 = vunpack.c.h.b16 %v129
    %v461 = vunpack.c.l.b16 %v130
    %v462 = vunpack.c.h.b16 %v130
    %v463 = vunpack.c.l.b16 %v131
    %v464 = vunpack.c.h.b16 %v131
    %v465 = vunpack.c.l.b16 %v132
    %v466 = vunpack.c.h.b16 %v132
    %v467 = vunpack.c.l.b16 %v133
    %v468 = vunpack.c.h.b16 %v133
    %v469 = vunpack.c.l.b16 %v134
    %v470 = vunpack.c.h.b16 %v134
    %v471 = vunpack.c.l.b16 %v135
    %v472 = vunpack.c.h.b16 %v135
    %v473 = vunpack.c.l.b16 %v136
    %v474 = vunpack.c.h.b16 %v136
    %v475 = vunpack.c.l.b16 %v137
    %v476 = vunpack.c.h.b16 %v137
    %v477 = vunpack.c.l.b16 %v138
    %v478 = vunpack.c.h.b16 %v138
    %v479 = vunpack.c.l.b16 %v139
    %v480 = vunpack.c.h.b16 %v139
    %v481 = vunpack.c.l.b16 %v140
    %v482 = vunpack.c.h.b16 %v140
    %v483 = vunpack.c.l.b16 %v141
    %v484 = vunpack.c.h.b16 %v141
    %v485 = vunpack.c.l.b16 %v142
    %v486 = vunpack.c.h.b16 %v142
    %v487 = vunpack.c.l.b16 %v143
    %v488 = vunpack.c.h.b16 %v143
    %v489 = vunpack.c.l.b16 %v144
    %v490 = vunpack.c.h.b16 %v144
    %v491 = vunpack.c.l.b16 %v145
    %v492 = vunpack.c.h.b16 %v145
    %v493 = vunpack.c.l.b16 %v146
    %v494 = vunpack.c.h.b16 %v146
    %v495 = vunpack.c.l.b16 %v147
    %v496 = vunpack.c.h.b16 %v147
    %v497 = vunpack.c.l.b16 %v148
    %v498 = vunpack.c.h.b16 %v148
    %v499 = vunpack.c.l.b16 %v149
    %v500 = vunpack.c.h.b16 %v149
    %v501 = vunpack.c.l.b16 %v150
    %v502 = vunpack.c.h.b16 %v150
    %v503 = vunpack.c.l.b16 %v151
    %v504 = vunpack.c.h.b16 %v151
    %v505 = vunpack.c.l.b16 %v152
    %v506 = vunpack.c.h.b16 %v152
    %v507 = vunpack.c.l.b16 %v153
    %v508 = vunpack.c.h.b16 %v153
    %v509 = vunpack.c.l.b16 %v154
    %v510 = vunpack.c.h.b16 %v154
    %v511 = vunpack.c.l.b16 %v155
    %v512 = vunpack.c.h.b16 %v155
    %v513 = vunpack.c.l.b16 %v156
    %v514 = vunpack.c.h.b16 %v156
    %v515 = vunpack.c.l.b16 %v157
    %v516 = vunpack.c.h.b16 %v157
    %v517 = vunpack.c.l.b16 %v158
    %v518 = vunpack.c.h.b16 %v158
    %v519 = vunpack.c.l.b16 %v159
    %v520 = vunpack.c.h.b16 %v159
    %v521 = vunpack.c.l.b16 %v160
    %v522 = vunpack.c.h.b16 %v160
    %v523 = vunpack.c.l.b16 %v161
    %v524 = vunpack.c.h.b16 %v161
    %v525 = vunpack.c.l.b16 %v162
    %v526 = vunpack.c.h.b16 %v162
    %v527 = vunpack.c.l.b16 %v163
    %v528 = vunpack.c.h.b16 %v163
    %v529 = vunpack.c.l.b16 %v164
    %v530 = vunpack.c.h.b16 %v164
    %v531 = vunpack.c.l.b16 %v165
    %v532 = vunpack.c.h.b16 %v165
    %v533 = vunpack.c.l.b16 %v166
    %v534 = vunpack.c.h.b16 %v166
    %v535 = vunpack.c.l.b16 %v167
    %v536 = vunpack.c.h.b16 %v167
    %v537 = vunpack.c.l.b16 %v168
    %v538 = vunpack.c.h.b16 %v168
    %v539 = vunpack.c.l.b16 %v169
    %v540 = vunpack.c.h.b16 %v169
    %v541 = vunpack.c.l.b16 %v170
    %v542 = vunpack.c.h.b16 %v170
    %v543 = vunpack.c.l.b16 %v171
    %v544 = vunpack.c.h.b16 %v171
    %v545 = vunpack.c.l.b16 %v172
    %v546 = vunpack.c.h.b16 %v172
    %v547 = vunpack.c.l.b16 %v173
    %v548 = vunpack.c.h.b16 %v173
    %v549 = vunpack.c.l.b16 %v174
    %v550 = vunpack.c.h.b16 %v174
    %v551 = vunpack.c.l.b16 %v175
    %v552 = vunpack.c.h.b16 %v175
    %v553 = vunpack.c.l.b16 %v176
    %v554 = vunpack.c.h.b16 %v176
    %v555 = vunpack.c.l.b16 %v177
    %v556 = vunpack.c.h.b16 %v177
    %v557 = vunpack.c.l.b16 %v178
    %v558 = vunpack.c.h.b16 %v178
    %v559 = vunpack.c.l.b16 %v179
    %v560 = vunpack.c.h.b16 %v179
    %v561 = vunpack.c.l.b16 %v180
    %v562 = vunpack.c.h.b16 %v180
    %v563 = vunpack.c.l.b16 %v181
    %v564 = vunpack.c.h.b16 %v181
    %v565 = vunpack.c.l.b16 %v182
    %v566 = vunpack.c.h.b16 %v182
    %v567 = vunpack.c.l.b16 %v183
    %v568 = vunpack.c.h.b16 %v183
    %v569 = vunpack.c.l.b16 %v184
    %v570 = vunpack.c.h.b16 %v184
    %v571 = vunpack.c.l.b16 %v185
    %v572 = vunpack.c.h.b16 %v185
    %v573 = vunpack.c.l.b16 %v186
    %v574 = vunpack.c.h.b16 %v186
    %v575 = vunpack.c.l.b16 %v187
    %v576 = vunpack.c.h.b16 %v187
    %v577 = vunpack.c.l.b16 %v188
    %v578 = vunpack.c.h.b16 %v188
    %v579 = vunpack.c.l.b16 %v189
    %v580 = vunpack.c.h.b16 %v189
    %v581 = vunpack.c.l.b16 %v190
    %v582 = vunpack.c.h.b16 %v190
    %v583 = vunpack.c.l.b16 %v191
    %v584 = vunpack.c.h.b16 %v191
    %v585 = vunpack.c.l.b16 %v192
    %v586 = vunpack.c.h.b16 %v192
    %v587 = vunpack.c.l.b16 %v193
    %v588 = vunpack.c.h.b16 %v193
    %v589 = vunpack.c.l.b16 %v194
    %v590 = vunpack.c.h.b16 %v194
    %v591 = vunpack.c.l.b16 %v195
    %v592 = vunpack.c.h.b16 %v195
    %v593 = vunpack.c.l.b16 %v196
    %v594 = vunpack.c.h.b16 %v196
    %v595 = vunpack.c.l.b16 %v197
    %v596 = vunpack.c.h.b16 %v197
    %v597 = vunpack.c.l.b16 %v198
    %v598 = vunpack.c.h.b16 %v198
    %v599 = vunpack.c.l.b16 %v199
    %v600 = vunpack.c.h.b16 %v199
    %v601 = vunpack.c.l.b16 %v200
    %v602 = vunpack.c.h.b16 %v200
    %v603 = vunpack.c.l.b16 %v201
    %v604 = vunpack.c.h.b16 %v201
    %v605 = vunpack.c.l.b16 %v202
    %v606 = vunpack.c.h.b16 %v202
    %v607 = vunpack.c.l.b16 %v203
    %v608 = vunpack.c.h.b16 %v203
    %v609 = vunpack.c.l.b16 %v204
    %v610 = vunpack.c.h.b16 %v204
    %v611 = vunpack.c.l.b16 %v205
    %v612 = vunpack.c.h.b16 %v205
    %v613 = vunpack.c.l.b16 %v206
    %v614 = vunpack.c.h.b16 %v206
    %v615 = vunpack.c.l.b16 %v207
    %v616 = vunpack.c.h.b16 %v207
    %v617 = vunpack.c.l.b16 %v208
    %v618 = vunpack.c.h.b16 %v208
    %v619 = vunpack.c.l.b16 %v209
    %v620 = vunpack.c.h.b16 %v209
    %v621 = vunpack.c.l.b16 %v210
    %v622 = vunpack.c.h.b16 %v210
    %v623 = vunpack.c.l.b16 %v211
    %v624 = vunpack.c.h.b16 %v211
    %v625 = vunpack.c.l.b16 %v212
    %v626 = vunpack.c.h.b16 %v212
    %v627 = vunpack.c.l.b16 %v213
    %v628 = vunpack.c.h.b16 %v213
    %v629 = vunpack.c.l.b16 %v214
    %v630 = vunpack.c.h.b16 %v214
    %v631 = vpack.c.b16 %v443, %v439
    %v632 = vpack.c.b16 %v444, %v440
    %v633 = vpack.c.b16 %v445, %v441
    %v634 = vpack.c.b16 %v446, %v442
    %v635 = vpack.c.b16 %v451, %v447
    %v636 = vpack.c.b16 %v452, %v448
    %v637 = vpack.c.b16 %v453, %v449
    %v638 = vpack.c.b16 %v454, %v450
    %v639 = vpack.c.b16 %v459, %v455
    %v640 = vpack.c.b16 %v460, %v456
    %v641 = vpack.c.b16 %v461, %v457
    %v642 = vpack.c.b16 %v462, %v458
    %v643 = vpack.c.b16 %v467, %v463
    %v644 = vpack.c.b16 %v468, %v464
    %v645 = vpack.c.b16 %v469, %v465
    %v646 = vpack.c.b16 %v470, %v466
    %v647 = vpack.c.b16 %v475, %v471
    %v648 = vpack.c.b16 %v476, %v472
    %v649 = vpack.c.b16 %v477, %v473
    %v650 = vpack.c.b16 %v478, %v474
    %v651 = vpack.c.b16 %v483, %v479
    %v652 = vpack.c.b16 %v484, %v480
    %v653 = vpack.c.b16 %v485, %v481
    %v654 = vpack.c.b16 %v486, %v482
    %v655 = vpack.c.b16 %v491, %v487
    %v656 = vpack.c.b16 %v492, %v488
    %v657 = vpack.c.b16 %v493, %v489
    %v658 = vpack.c.b16 %v494, %v490
    %v659 = vpack.c.b16 %v499, %v495
    %v660 = vpack.c.b16 %v500, %v496
    %v661 = vpack.c.b16 %v501, %v497
    %v662 = vpack.c.b16 %v502, %v498
    %v663 = vpack.c.b16 %v507, %v503
    %v664 = vpack.c.b16 %v508, %v504
    %v665 = vpack.c.b16 %v509, %v505
    %v666 = vpack.c.b16 %v510, %v506
    %v667 = vpack.c.b16 %v515, %v511
    %v668 = vpack.c.b16 %v516, %v512
    %v669 = vpack.c.b16 %v517, %v513
    %v670 = vpack.c.b16 %v518, %v514
    %v671 = vpack.c.b16 %v523, %v519
    %v672 = vpack.c.b16 %v524, %v520
    %v673 = vpack.c.b16 %v525, %v521
    %v674 = vpack.c.b16 %v526, %v522
    %v675 = vpack.c.b16 %v531, %v527
    %v676 = vpack.c.b16 %v532, %v528
    %v677 = vpack.c.b16 %v533, %v529
    %v678 = vpack.c.b16 %v534, %v530
    %v679 = vpack.c.b16 %v539, %v535
    %v680 = vpack.c.b16 %v540, %v536
    %v681 = vpack.c.b16 %v541, %v537
    %v682 = vpack.c.b16 %v542, %v538
    %v683 = vpack.c.b16 %v547, %v543
    %v684 = vpack.c.b16 %v548, %v544
    %v685 = vpack.c.b16 %v549, %v545
    %v686 = vpack.c.b16 %v550, %v546
    %v687 = vpack.c.b16 %v555, %v551
    %v688 = vpack.c.b16 %v556, %v552
    %v689 = vpack.c.b16 %v557, %v553
    %v690 = vpack.c.b16 %v558, %v554
    %v691 = vpack.c.b16 %v563, %v559
    %v692 = vpack.c.b16 %v564, %v560
    %v693 = vpack.c.b16 %v565, %v561
    %v694 = vpack.c.b16 %v566, %v562
    %v695 = vpack.c.b16 %v571, %v567
    %v696 = vpack.c.b16 %v572, %v568
    %v697 = vpack.c.b16 %v573, %v569
    %v698 = vpack.c.b16 %v574, %v570
    %v699 = vpack.c.b16 %v579, %v575
    %v700 = vpack.c.b16 %v580, %v576
    %v701 = vpack.c.b16 %v581, %v577
    %v702 = vpack.c.b16 %v582, %v578
    %v703 = vpack.c.b16 %v587, %v583
    %v704 = vpack.c.b16 %v588, %v584
    %v705 = vpack.c.b16 %v589, %v585
    %v706 = vpack.c.b16 %v590, %v586
    %v707 = vpack.c.b16 %v595, %v591
    %v708 = vpack.c.b16 %v596, %v592
    %v709 = vpack.c.b16 %v597, %v593
    %v710 = vpack.c.b16 %v598, %v594
    %v711 = vpack.c.b16 %v603, %v599
    %v712 = vpack.c.b16 %v604, %v600
    %v713 = vpack.c.b16 %v605, %v601
    %v714 = vpack.c.b16 %v606, %v602
    %v715 = vpack.c.b16 %v611, %v607
    %v716 = vpack.c.b16 %v612, %v608
    %v717 = vpack.c.b16 %v613, %v609
    %v718 = vpack.c.b16 %v614, %v610
    %v719 = vpack.c.b16 %v619, %v615
    %v720 = vpack.c.b16 %v620, %v616
    %v721 = vpack.c.b16 %v621, %v617
    %v722 = vpack.c.b16 %v622, %v618
    %v723 = vpack.c.b16 %v627, %v623
    %v724 = vpack.c.b16 %v628, %v624
    %v725 = vpack.c.b16 %v629, %v625
    %v726 = vpack.c.b16 %v630, %v626
    %823 = vmatpush.bf16.msra.mxu0 %v659
    %824 = vmatpush.bf16.msra.mxu0 %v655
    %825 = vmatpush.bf16.msra.mxu0 %v651
    %826 = vmatpush.bf16.msra.mxu0 %v647
    %827 = vmatpush.bf16.msra.mxu0 %v643
    %828 = vmatpush.bf16.msra.mxu0 %v639
    %829 = vmatpush.bf16.msra.mxu0 %v635
    %830 = vmatpush.bf16.msra.mxu0 %v631
    %831 = vmatmul.bf16.gmra.mxu0 %v295
    %v832 = vpop.f32.mrf.mxu0
    %v833 = vadd.f32 0.0, %v832
    %v834 = vpop.f32.mrf.mxu0
    %v835 = vadd.f32 0.0, %v834
    %836 = vmatmul.bf16.gmra.mxu0 %v298
    %v837 = vpop.f32.mrf.mxu0
    %v838 = vadd.f32 0.0, %v837
    %v839 = vpop.f32.mrf.mxu0
    %v840 = vadd.f32 0.0, %v839
    %841 = vmatmul.bf16.gmra.mxu0 %v301
    %v842 = vpop.f32.mrf.mxu0
    %v843 = vadd.f32 0.0, %v842
    %v844 = vpop.f32.mrf.mxu0
    %v845 = vadd.f32 0.0, %v844
    %846 = vmatmul.bf16.gmra.mxu0 %v304
    %v847 = vpop.f32.mrf.mxu0
    %v848 = vadd.f32 0.0, %v847
    %v849 = vpop.f32.mrf.mxu0
    %v850 = vadd.f32 0.0, %v849
    %851 = vmatmul.bf16.gmra.mxu0 %v307
    %v852 = vpop.f32.mrf.mxu0
    %v853 = vadd.f32 0.0, %v852
    %v854 = vpop.f32.mrf.mxu0
    %v855 = vadd.f32 0.0, %v854
    %856 = vmatmul.bf16.gmra.mxu0 %v310
    %v857 = vpop.f32.mrf.mxu0
    %v858 = vadd.f32 0.0, %v857
    %v859 = vpop.f32.mrf.mxu0
    %v860 = vadd.f32 0.0, %v859
    %861 = vmatmul.bf16.gmra.mxu0 %v313
    %v862 = vpop.f32.mrf.mxu0
    %v863 = vadd.f32 0.0, %v862
    %v864 = vpop.f32.mrf.mxu0
    %v865 = vadd.f32 0.0, %v864
    %866 = vmatmul.bf16.gmra.mxu0 %v316
    %v867 = vpop.f32.mrf.mxu0
    %v868 = vadd.f32 0.0, %v867
    %v869 = vpop.f32.mrf.mxu0
    %v870 = vadd.f32 0.0, %v869
    %871 = vdwg.mxu0
    %872 = vmatpush.bf16.msra.mxu0 %v691
    %873 = vmatpush.bf16.msra.mxu0 %v687
    %874 = vmatpush.bf16.msra.mxu0 %v683
    %875 = vmatpush.bf16.msra.mxu0 %v679
    %876 = vmatpush.bf16.msra.mxu0 %v675
    %877 = vmatpush.bf16.msra.mxu0 %v671
    %878 = vmatpush.bf16.msra.mxu0 %v667
    %879 = vmatpush.bf16.msra.mxu0 %v663
    %880 = vmatmul.bf16.gmra.mxu0 %v296
    %v881 = vpop.f32.mrf.mxu0
    %v882 = vadd.f32 %v833, %v881
    %v883 = vpop.f32.mrf.mxu0
    %v884 = vadd.f32 %v835, %v883
    %885 = vmatmul.bf16.gmra.mxu0 %v299
    %v886 = vpop.f32.mrf.mxu0
    %v887 = vadd.f32 %v838, %v886
    %v888 = vpop.f32.mrf.mxu0
    %v889 = vadd.f32 %v840, %v888
    %890 = vmatmul.bf16.gmra.mxu0 %v302
    %v891 = vpop.f32.mrf.mxu0
    %v892 = vadd.f32 %v843, %v891
    %v893 = vpop.f32.mrf.mxu0
    %v894 = vadd.f32 %v845, %v893
    %895 = vmatmul.bf16.gmra.mxu0 %v305
    %v896 = vpop.f32.mrf.mxu0
    %v897 = vadd.f32 %v848, %v896
    %v898 = vpop.f32.mrf.mxu0
    %v899 = vadd.f32 %v850, %v898
    %900 = vmatmul.bf16.gmra.mxu0 %v308
    %v901 = vpop.f32.mrf.mxu0
    %v902 = vadd.f32 %v853, %v901
    %v903 = vpop.f32.mrf.mxu0
    %v904 = vadd.f32 %v855, %v903
    %905 = vmatmul.bf16.gmra.mxu0 %v311
    %v906 = vpop.f32.mrf.mxu0
    %v907 = vadd.f32 %v858, %v906
    %v908 = vpop.f32.mrf.mxu0
    %v909 = vadd.f32 %v860, %v908
    %910 = vmatmul.bf16.gmra.mxu0 %v314
    %v911 = vpop.f32.mrf.mxu0
    %v912 = vadd.f32 %v863, %v911
    %v913 = vpop.f32.mrf.mxu0
    %v914 = vadd.f32 %v865, %v913
    %915 = vmatmul.bf16.gmra.mxu0 %v317
    %v916 = vpop.f32.mrf.mxu0
    %v917 = vadd.f32 %v868, %v916
    %v918 = vpop.f32.mrf.mxu0
    %v919 = vadd.f32 %v870, %v918
    %920 = vdwg.mxu0
    %921 = vmatpush.bf16.msra.mxu0 %v723
    %922 = vmatpush.bf16.msra.mxu0 %v719
    %923 = vmatpush.bf16.msra.mxu0 %v715
    %924 = vmatpush.bf16.msra.mxu0 %v711
    %925 = vmatpush.bf16.msra.mxu0 %v707
    %926 = vmatpush.bf16.msra.mxu0 %v703
    %927 = vmatpush.bf16.msra.mxu0 %v699
    %928 = vmatpush.bf16.msra.mxu0 %v695
    %929 = vmatmul.bf16.gmra.mxu0 %v297
    %v930 = vpop.f32.mrf.mxu0
    %v931 = vadd.f32 %v882, %v930
    %v932 = vpop.f32.mrf.mxu0
    %v933 = vadd.f32 %v884, %v932
    %934 = vmatmul.bf16.gmra.mxu0 %v300
    %v935 = vpop.f32.mrf.mxu0
    %v936 = vadd.f32 %v887, %v935
    %v937 = vpop.f32.mrf.mxu0
    %v938 = vadd.f32 %v889, %v937
    %939 = vmatmul.bf16.gmra.mxu0 %v303
    %v940 = vpop.f32.mrf.mxu0
    %v941 = vadd.f32 %v892, %v940
    %v942 = vpop.f32.mrf.mxu0
    %v943 = vadd.f32 %v894, %v942
    %944 = vmatmul.bf16.gmra.mxu0 %v306
    %v945 = vpop.f32.mrf.mxu0
    %v946 = vadd.f32 %v897, %v945
    %v947 = vpop.f32.mrf.mxu0
    %v948 = vadd.f32 %v899, %v947
    %949 = vmatmul.bf16.gmra.mxu0 %v309
    %v950 = vpop.f32.mrf.mxu0
    %v951 = vadd.f32 %v902, %v950
    %v952 = vpop.f32.mrf.mxu0
    %v953 = vadd.f32 %v904, %v952
    %954 = vmatmul.bf16.gmra.mxu0 %v312
    %v955 = vpop.f32.mrf.mxu0
    %v956 = vadd.f32 %v907, %v955
    %v957 = vpop.f32.mrf.mxu0
    %v958 = vadd.f32 %v909, %v957
    %959 = vmatmul.bf16.gmra.mxu0 %v315
    %v960 = vpop.f32.mrf.mxu0
    %v961 = vadd.f32 %v912, %v960
    %v962 = vpop.f32.mrf.mxu0
    %v963 = vadd.f32 %v914, %v962
    %964 = vmatmul.bf16.gmra.mxu0 %v318
    %v965 = vpop.f32.mrf.mxu0
    %v966 = vadd.f32 %v917, %v965
    %v967 = vpop.f32.mrf.mxu0
    %v968 = vadd.f32 %v919, %v967
    %969 = vdwg.mxu0
    %970 = vmatpush.bf16.msra.mxu0 %v660
    %971 = vmatpush.bf16.msra.mxu0 %v656
    %972 = vmatpush.bf16.msra.mxu0 %v652
    %973 = vmatpush.bf16.msra.mxu0 %v648
    %974 = vmatpush.bf16.msra.mxu0 %v644
    %975 = vmatpush.bf16.msra.mxu0 %v640
    %976 = vmatpush.bf16.msra.mxu0 %v636
    %977 = vmatpush.bf16.msra.mxu0 %v632
    %978 = vmatmul.bf16.gmra.mxu0 %v295
    %v979 = vpop.f32.mrf.mxu0
    %v980 = vadd.f32 0.0, %v979
    %v981 = vpop.f32.mrf.mxu0
    %v982 = vadd.f32 0.0, %v981
    %983 = vmatmul.bf16.gmra.mxu0 %v298
    %v984 = vpop.f32.mrf.mxu0
    %v985 = vadd.f32 0.0, %v984
    %v986 = vpop.f32.mrf.mxu0
    %v987 = vadd.f32 0.0, %v986
    %988 = vmatmul.bf16.gmra.mxu0 %v301
    %v989 = vpop.f32.mrf.mxu0
    %v990 = vadd.f32 0.0, %v989
    %v991 = vpop.f32.mrf.mxu0
    %v992 = vadd.f32 0.0, %v991
    %993 = vmatmul.bf16.gmra.mxu0 %v304
    %v994 = vpop.f32.mrf.mxu0
    %v995 = vadd.f32 0.0, %v994
    %v996 = vpop.f32.mrf.mxu0
    %v997 = vadd.f32 0.0, %v996
    %998 = vmatmul.bf16.gmra.mxu0 %v307
    %v999 = vpop.f32.mrf.mxu0
    %v1000 = vadd.f32 0.0, %v999
    %v1001 = vpop.f32.mrf.mxu0
    %v1002 = vadd.f32 0.0, %v1001
    %1003 = vmatmul.bf16.gmra.mxu0 %v310
    %v1004 = vpop.f32.mrf.mxu0
    %v1005 = vadd.f32 0.0, %v1004
    %v1006 = vpop.f32.mrf.mxu0
    %v1007 = vadd.f32 0.0, %v1006
    %1008 = vmatmul.bf16.gmra.mxu0 %v313
    %v1009 = vpop.f32.mrf.mxu0
    %v1010 = vadd.f32 0.0, %v1009
    %v1011 = vpop.f32.mrf.mxu0
    %v1012 = vadd.f32 0.0, %v1011
    %1013 = vmatmul.bf16.gmra.mxu0 %v316
    %v1014 = vpop.f32.mrf.mxu0
    %v1015 = vadd.f32 0.0, %v1014
    %v1016 = vpop.f32.mrf.mxu0
    %v1017 = vadd.f32 0.0, %v1016
    %1018 = vdwg.mxu0
    %1019 = vmatpush.bf16.msra.mxu0 %v692
    %1020 = vmatpush.bf16.msra.mxu0 %v688
    %1021 = vmatpush.bf16.msra.mxu0 %v684
    %1022 = vmatpush.bf16.msra.mxu0 %v680
    %1023 = vmatpush.bf16.msra.mxu0 %v676
    %1024 = vmatpush.bf16.msra.mxu0 %v672
    %1025 = vmatpush.bf16.msra.mxu0 %v668
    %1026 = vmatpush.bf16.msra.mxu0 %v664
    %1027 = vmatmul.bf16.gmra.mxu0 %v296
    %v1028 = vpop.f32.mrf.mxu0
    %v1029 = vadd.f32 %v980, %v1028
    %v1030 = vpop.f32.mrf.mxu0
    %v1031 = vadd.f32 %v982, %v1030
    %1032 = vmatmul.bf16.gmra.mxu0 %v299
    %v1033 = vpop.f32.mrf.mxu0
    %v1034 = vadd.f32 %v985, %v1033
    %v1035 = vpop.f32.mrf.mxu0
    %v1036 = vadd.f32 %v987, %v1035
    %1037 = vmatmul.bf16.gmra.mxu0 %v302
    %v1038 = vpop.f32.mrf.mxu0
    %v1039 = vadd.f32 %v990, %v1038
    %v1040 = vpop.f32.mrf.mxu0
    %v1041 = vadd.f32 %v992, %v1040
    %1042 = vmatmul.bf16.gmra.mxu0 %v305
    %v1043 = vpop.f32.mrf.mxu0
    %v1044 = vadd.f32 %v995, %v1043
    %v1045 = vpop.f32.mrf.mxu0
    %v1046 = vadd.f32 %v997, %v1045
    %1047 = vmatmul.bf16.gmra.mxu0 %v308
    %v1048 = vpop.f32.mrf.mxu0
    %v1049 = vadd.f32 %v1000, %v1048
    %v1050 = vpop.f32.mrf.mxu0
    %v1051 = vadd.f32 %v1002, %v1050
    %1052 = vmatmul.bf16.gmra.mxu0 %v311
    %v1053 = vpop.f32.mrf.mxu0
    %v1054 = vadd.f32 %v1005, %v1053
    %v1055 = vpop.f32.mrf.mxu0
    %v1056 = vadd.f32 %v1007, %v1055
    %1057 = vmatmul.bf16.gmra.mxu0 %v314
    %v1058 = vpop.f32.mrf.mxu0
    %v1059 = vadd.f32 %v1010, %v1058
    %v1060 = vpop.f32.mrf.mxu0
    %v1061 = vadd.f32 %v1012, %v1060
    %1062 = vmatmul.bf16.gmra.mxu0 %v317
    %v1063 = vpop.f32.mrf.mxu0
    %v1064 = vadd.f32 %v1015, %v1063
    %v1065 = vpop.f32.mrf.mxu0
    %v1066 = vadd.f32 %v1017, %v1065
    %1067 = vdwg.mxu0
    %1068 = vmatpush.bf16.msra.mxu0 %v724
    %1069 = vmatpush.bf16.msra.mxu0 %v720
    %1070 = vmatpush.bf16.msra.mxu0 %v716
    %1071 = vmatpush.bf16.msra.mxu0 %v712
    %1072 = vmatpush.bf16.msra.mxu0 %v708
    %1073 = vmatpush.bf16.msra.mxu0 %v704
    %1074 = vmatpush.bf16.msra.mxu0 %v700
    %1075 = vmatpush.bf16.msra.mxu0 %v696
    %1076 = vmatmul.bf16.gmra.mxu0 %v297
    %v1077 = vpop.f32.mrf.mxu0
    %v1078 = vadd.f32 %v1029, %v1077
    %v1079 = vpop.f32.mrf.mxu0
    %v1080 = vadd.f32 %v1031, %v1079
    %1081 = vmatmul.bf16.gmra.mxu0 %v300
    %v1082 = vpop.f32.mrf.mxu0
    %v1083 = vadd.f32 %v1034, %v1082
    %v1084 = vpop.f32.mrf.mxu0
    %v1085 = vadd.f32 %v1036, %v1084
    %1086 = vmatmul.bf16.gmra.mxu0 %v303
    %v1087 = vpop.f32.mrf.mxu0
    %v1088 = vadd.f32 %v1039, %v1087
    %v1089 = vpop.f32.mrf.mxu0
    %v1090 = vadd.f32 %v1041, %v1089
    %1091 = vmatmul.bf16.gmra.mxu0 %v306
    %v1092 = vpop.f32.mrf.mxu0
    %v1093 = vadd.f32 %v1044, %v1092
    %v1094 = vpop.f32.mrf.mxu0
    %v1095 = vadd.f32 %v1046, %v1094
    %1096 = vmatmul.bf16.gmra.mxu0 %v309
    %v1097 = vpop.f32.mrf.mxu0
    %v1098 = vadd.f32 %v1049, %v1097
    %v1099 = vpop.f32.mrf.mxu0
    %v1100 = vadd.f32 %v1051, %v1099
    %1101 = vmatmul.bf16.gmra.mxu0 %v312
    %v1102 = vpop.f32.mrf.mxu0
    %v1103 = vadd.f32 %v1054, %v1102
    %v1104 = vpop.f32.mrf.mxu0
    %v1105 = vadd.f32 %v1056, %v1104
    %1106 = vmatmul.bf16.gmra.mxu0 %v315
    %v1107 = vpop.f32.mrf.mxu0
    %v1108 = vadd.f32 %v1059, %v1107
    %v1109 = vpop.f32.mrf.mxu0
    %v1110 = vadd.f32 %v1061, %v1109
    %1111 = vmatmul.bf16.gmra.mxu0 %v318
    %v1112 = vpop.f32.mrf.mxu0
    %v1113 = vadd.f32 %v1064, %v1112
    %v1114 = vpop.f32.mrf.mxu0
    %v1115 = vadd.f32 %v1066, %v1114
    %1116 = vdwg.mxu0
    %1117 = vmatpush.bf16.msra.mxu0 %v661
    %1118 = vmatpush.bf16.msra.mxu0 %v657
    %1119 = vmatpush.bf16.msra.mxu0 %v653
    %1120 = vmatpush.bf16.msra.mxu0 %v649
    %1121 = vmatpush.bf16.msra.mxu0 %v645
    %1122 = vmatpush.bf16.msra.mxu0 %v641
    %1123 = vmatpush.bf16.msra.mxu0 %v637
    %1124 = vmatpush.bf16.msra.mxu0 %v633
    %1125 = vmatmul.bf16.gmra.mxu0 %v295
    %v1126 = vpop.f32.mrf.mxu0
    %v1127 = vadd.f32 0.0, %v1126
    %v1128 = vpop.f32.mrf.mxu0
    %v1129 = vadd.f32 0.0, %v1128
    %1130 = vmatmul.bf16.gmra.mxu0 %v298
    %v1131 = vpop.f32.mrf.mxu0
    %v1132 = vadd.f32 0.0, %v1131
    %v1133 = vpop.f32.mrf.mxu0
    %v1134 = vadd.f32 0.0, %v1133
    %1135 = vmatmul.bf16.gmra.mxu0 %v301
    %v1136 = vpop.f32.mrf.mxu0
    %v1137 = vadd.f32 0.0, %v1136
    %v1138 = vpop.f32.mrf.mxu0
    %v1139 = vadd.f32 0.0, %v1138
    %1140 = vmatmul.bf16.gmra.mxu0 %v304
    %v1141 = vpop.f32.mrf.mxu0
    %v1142 = vadd.f32 0.0, %v1141
    %v1143 = vpop.f32.mrf.mxu0
    %v1144 = vadd.f32 0.0, %v1143
    %1145 = vmatmul.bf16.gmra.mxu0 %v307
    %v1146 = vpop.f32.mrf.mxu0
    %v1147 = vadd.f32 0.0, %v1146
    %v1148 = vpop.f32.mrf.mxu0
    %v1149 = vadd.f32 0.0, %v1148
    %1150 = vmatmul.bf16.gmra.mxu0 %v310
    %v1151 = vpop.f32.mrf.mxu0
    %v1152 = vadd.f32 0.0, %v1151
    %v1153 = vpop.f32.mrf.mxu0
    %v1154 = vadd.f32 0.0, %v1153
    %1155 = vmatmul.bf16.gmra.mxu0 %v313
    %v1156 = vpop.f32.mrf.mxu0
    %v1157 = vadd.f32 0.0, %v1156
    %v1158 = vpop.f32.mrf.mxu0
    %v1159 = vadd.f32 0.0, %v1158
    %1160 = vmatmul.bf16.gmra.mxu0 %v316
    %v1161 = vpop.f32.mrf.mxu0
    %v1162 = vadd.f32 0.0, %v1161
    %v1163 = vpop.f32.mrf.mxu0
    %v1164 = vadd.f32 0.0, %v1163
    %1165 = vdwg.mxu0
    %1166 = vmatpush.bf16.msra.mxu0 %v693
    %1167 = vmatpush.bf16.msra.mxu0 %v689
    %1168 = vmatpush.bf16.msra.mxu0 %v685
    %1169 = vmatpush.bf16.msra.mxu0 %v681
    %1170 = vmatpush.bf16.msra.mxu0 %v677
    %1171 = vmatpush.bf16.msra.mxu0 %v673
    %1172 = vmatpush.bf16.msra.mxu0 %v669
    %1173 = vmatpush.bf16.msra.mxu0 %v665
    %1174 = vmatmul.bf16.gmra.mxu0 %v296
    %v1175 = vpop.f32.mrf.mxu0
    %v1176 = vadd.f32 %v1127, %v1175
    %v1177 = vpop.f32.mrf.mxu0
    %v1178 = vadd.f32 %v1129, %v1177
    %1179 = vmatmul.bf16.gmra.mxu0 %v299
    %v1180 = vpop.f32.mrf.mxu0
    %v1181 = vadd.f32 %v1132, %v1180
    %v1182 = vpop.f32.mrf.mxu0
    %v1183 = vadd.f32 %v1134, %v1182
    %1184 = vmatmul.bf16.gmra.mxu0 %v302
    %v1185 = vpop.f32.mrf.mxu0
    %v1186 = vadd.f32 %v1137, %v1185
    %v1187 = vpop.f32.mrf.mxu0
    %v1188 = vadd.f32 %v1139, %v1187
    %1189 = vmatmul.bf16.gmra.mxu0 %v305
    %v1190 = vpop.f32.mrf.mxu0
    %v1191 = vadd.f32 %v1142, %v1190
    %v1192 = vpop.f32.mrf.mxu0
    %v1193 = vadd.f32 %v1144, %v1192
    %1194 = vmatmul.bf16.gmra.mxu0 %v308
    %v1195 = vpop.f32.mrf.mxu0
    %v1196 = vadd.f32 %v1147, %v1195
    %v1197 = vpop.f32.mrf.mxu0
    %v1198 = vadd.f32 %v1149, %v1197
    %1199 = vmatmul.bf16.gmra.mxu0 %v311
    %v1200 = vpop.f32.mrf.mxu0
    %v1201 = vadd.f32 %v1152, %v1200
    %v1202 = vpop.f32.mrf.mxu0
    %v1203 = vadd.f32 %v1154, %v1202
    %1204 = vmatmul.bf16.gmra.mxu0 %v314
    %v1205 = vpop.f32.mrf.mxu0
    %v1206 = vadd.f32 %v1157, %v1205
    %v1207 = vpop.f32.mrf.mxu0
    %v1208 = vadd.f32 %v1159, %v1207
    %1209 = vmatmul.bf16.gmra.mxu0 %v317
    %v1210 = vpop.f32.mrf.mxu0
    %v1211 = vadd.f32 %v1162, %v1210
    %v1212 = vpop.f32.mrf.mxu0
    %v1213 = vadd.f32 %v1164, %v1212
    %1214 = vdwg.mxu0
    %1215 = vmatpush.bf16.msra.mxu0 %v725
    %1216 = vmatpush.bf16.msra.mxu0 %v721
    %1217 = vmatpush.bf16.msra.mxu0 %v717
    %1218 = vmatpush.bf16.msra.mxu0 %v713
    %1219 = vmatpush.bf16.msra.mxu0 %v709
    %1220 = vmatpush.bf16.msra.mxu0 %v705
    %1221 = vmatpush.bf16.msra.mxu0 %v701
    %1222 = vmatpush.bf16.msra.mxu0 %v697
    %1223 = vmatmul.bf16.gmra.mxu0 %v297
    %v1224 = vpop.f32.mrf.mxu0
    %v1225 = vadd.f32 %v1176, %v1224
    %v1226 = vpop.f32.mrf.mxu0
    %v1227 = vadd.f32 %v1178, %v1226
    %1228 = vmatmul.bf16.gmra.mxu0 %v300
    %v1229 = vpop.f32.mrf.mxu0
    %v1230 = vadd.f32 %v1181, %v1229
    %v1231 = vpop.f32.mrf.mxu0
    %v1232 = vadd.f32 %v1183, %v1231
    %1233 = vmatmul.bf16.gmra.mxu0 %v303
    %v1234 = vpop.f32.mrf.mxu0
    %v1235 = vadd.f32 %v1186, %v1234
    %v1236 = vpop.f32.mrf.mxu0
    %v1237 = vadd.f32 %v1188, %v1236
    %1238 = vmatmul.bf16.gmra.mxu0 %v306
    %v1239 = vpop.f32.mrf.mxu0
    %v1240 = vadd.f32 %v1191, %v1239
    %v1241 = vpop.f32.mrf.mxu0
    %v1242 = vadd.f32 %v1193, %v1241
    %1243 = vmatmul.bf16.gmra.mxu0 %v309
    %v1244 = vpop.f32.mrf.mxu0
    %v1245 = vadd.f32 %v1196, %v1244
    %v1246 = vpop.f32.mrf.mxu0
    %v1247 = vadd.f32 %v1198, %v1246
    %1248 = vmatmul.bf16.gmra.mxu0 %v312
    %v1249 = vpop.f32.mrf.mxu0
    %v1250 = vadd.f32 %v1201, %v1249
    %v1251 = vpop.f32.mrf.mxu0
    %v1252 = vadd.f32 %v1203, %v1251
    %1253 = vmatmul.bf16.gmra.mxu0 %v315
    %v1254 = vpop.f32.mrf.mxu0
    %v1255 = vadd.f32 %v1206, %v1254
    %v1256 = vpop.f32.mrf.mxu0
    %v1257 = vadd.f32 %v1208, %v1256
    %1258 = vmatmul.bf16.gmra.mxu0 %v318
    %v1259 = vpop.f32.mrf.mxu0
    %v1260 = vadd.f32 %v1211, %v1259
    %v1261 = vpop.f32.mrf.mxu0
    %v1262 = vadd.f32 %v1213, %v1261
    %1263 = vdwg.mxu0
    %1264 = vmatpush.bf16.msra.mxu0 %v662
    %1265 = vmatpush.bf16.msra.mxu0 %v658
    %1266 = vmatpush.bf16.msra.mxu0 %v654
    %1267 = vmatpush.bf16.msra.mxu0 %v650
    %1268 = vmatpush.bf16.msra.mxu0 %v646
    %1269 = vmatpush.bf16.msra.mxu0 %v642
    %1270 = vmatpush.bf16.msra.mxu0 %v638
    %1271 = vmatpush.bf16.msra.mxu0 %v634
    %1272 = vmatmul.bf16.gmra.mxu0 %v295
    %v1273 = vpop.f32.mrf.mxu0
    %v1274 = vadd.f32 0.0, %v1273
    %v1275 = vpop.f32.mrf.mxu0
    %v1276 = vadd.f32 0.0, %v1275
    %1277 = vmatmul.bf16.gmra.mxu0 %v298
    %v1278 = vpop.f32.mrf.mxu0
    %v1279 = vadd.f32 0.0, %v1278
    %v1280 = vpop.f32.mrf.mxu0
    %v1281 = vadd.f32 0.0, %v1280
    %1282 = vmatmul.bf16.gmra.mxu0 %v301
    %v1283 = vpop.f32.mrf.mxu0
    %v1284 = vadd.f32 0.0, %v1283
    %v1285 = vpop.f32.mrf.mxu0
    %v1286 = vadd.f32 0.0, %v1285
    %1287 = vmatmul.bf16.gmra.mxu0 %v304
    %v1288 = vpop.f32.mrf.mxu0
    %v1289 = vadd.f32 0.0, %v1288
    %v1290 = vpop.f32.mrf.mxu0
    %v1291 = vadd.f32 0.0, %v1290
    %1292 = vmatmul.bf16.gmra.mxu0 %v307
    %v1293 = vpop.f32.mrf.mxu0
    %v1294 = vadd.f32 0.0, %v1293
    %v1295 = vpop.f32.mrf.mxu0
    %v1296 = vadd.f32 0.0, %v1295
    %1297 = vmatmul.bf16.gmra.mxu0 %v310
    %v1298 = vpop.f32.mrf.mxu0
    %v1299 = vadd.f32 0.0, %v1298
    %v1300 = vpop.f32.mrf.mxu0
    %v1301 = vadd.f32 0.0, %v1300
    %1302 = vmatmul.bf16.gmra.mxu0 %v313
    %v1303 = vpop.f32.mrf.mxu0
    %v1304 = vadd.f32 0.0, %v1303
    %v1305 = vpop.f32.mrf.mxu0
    %v1306 = vadd.f32 0.0, %v1305
    %1307 = vmatmul.bf16.gmra.mxu0 %v316
    %v1308 = vpop.f32.mrf.mxu0
    %v1309 = vadd.f32 0.0, %v1308
    %v1310 = vpop.f32.mrf.mxu0
    %v1311 = vadd.f32 0.0, %v1310
    %1312 = vdwg.mxu0
    %1313 = vmatpush.bf16.msra.mxu0 %v694
    %1314 = vmatpush.bf16.msra.mxu0 %v690
    %1315 = vmatpush.bf16.msra.mxu0 %v686
    %1316 = vmatpush.bf16.msra.mxu0 %v682
    %1317 = vmatpush.bf16.msra.mxu0 %v678
    %1318 = vmatpush.bf16.msra.mxu0 %v674
    %1319 = vmatpush.bf16.msra.mxu0 %v670
    %1320 = vmatpush.bf16.msra.mxu0 %v666
    %1321 = vmatmul.bf16.gmra.mxu0 %v296
    %v1322 = vpop.f32.mrf.mxu0
    %v1323 = vadd.f32 %v1274, %v1322
    %v1324 = vpop.f32.mrf.mxu0
    %v1325 = vadd.f32 %v1276, %v1324
    %1326 = vmatmul.bf16.gmra.mxu0 %v299
    %v1327 = vpop.f32.mrf.mxu0
    %v1328 = vadd.f32 %v1279, %v1327
    %v1329 = vpop.f32.mrf.mxu0
    %v1330 = vadd.f32 %v1281, %v1329
    %1331 = vmatmul.bf16.gmra.mxu0 %v302
    %v1332 = vpop.f32.mrf.mxu0
    %v1333 = vadd.f32 %v1284, %v1332
    %v1334 = vpop.f32.mrf.mxu0
    %v1335 = vadd.f32 %v1286, %v1334
    %1336 = vmatmul.bf16.gmra.mxu0 %v305
    %v1337 = vpop.f32.mrf.mxu0
    %v1338 = vadd.f32 %v1289, %v1337
    %v1339 = vpop.f32.mrf.mxu0
    %v1340 = vadd.f32 %v1291, %v1339
    %1341 = vmatmul.bf16.gmra.mxu0 %v308
    %v1342 = vpop.f32.mrf.mxu0
    %v1343 = vadd.f32 %v1294, %v1342
    %v1344 = vpop.f32.mrf.mxu0
    %v1345 = vadd.f32 %v1296, %v1344
    %1346 = vmatmul.bf16.gmra.mxu0 %v311
    %v1347 = vpop.f32.mrf.mxu0
    %v1348 = vadd.f32 %v1299, %v1347
    %v1349 = vpop.f32.mrf.mxu0
    %v1350 = vadd.f32 %v1301, %v1349
    %1351 = vmatmul.bf16.gmra.mxu0 %v314
    %v1352 = vpop.f32.mrf.mxu0
    %v1353 = vadd.f32 %v1304, %v1352
    %v1354 = vpop.f32.mrf.mxu0
    %v1355 = vadd.f32 %v1306, %v1354
    %1356 = vmatmul.bf16.gmra.mxu0 %v317
    %v1357 = vpop.f32.mrf.mxu0
    %v1358 = vadd.f32 %v1309, %v1357
    %v1359 = vpop.f32.mrf.mxu0
    %v1360 = vadd.f32 %v1311, %v1359
    %1361 = vdwg.mxu0
    %1362 = vmatpush.bf16.msra.mxu0 %v726
    %1363 = vmatpush.bf16.msra.mxu0 %v722
    %1364 = vmatpush.bf16.msra.mxu0 %v718
    %1365 = vmatpush.bf16.msra.mxu0 %v714
    %1366 = vmatpush.bf16.msra.mxu0 %v710
    %1367 = vmatpush.bf16.msra.mxu0 %v706
    %1368 = vmatpush.bf16.msra.mxu0 %v702
    %1369 = vmatpush.bf16.msra.mxu0 %v698
    %1370 = vmatmul.bf16.gmra.mxu0 %v297
    %v1371 = vpop.f32.mrf.mxu0
    %v1372 = vadd.f32 %v1323, %v1371
    %v1373 = vpop.f32.mrf.mxu0
    %v1374 = vadd.f32 %v1325, %v1373
    %1375 = vmatmul.bf16.gmra.mxu0 %v300
    %v1376 = vpop.f32.mrf.mxu0
    %v1377 = vadd.f32 %v1328, %v1376
    %v1378 = vpop.f32.mrf.mxu0
    %v1379 = vadd.f32 %v1330, %v1378
    %1380 = vmatmul.bf16.gmra.mxu0 %v303
    %v1381 = vpop.f32.mrf.mxu0
    %v1382 = vadd.f32 %v1333, %v1381
    %v1383 = vpop.f32.mrf.mxu0
    %v1384 = vadd.f32 %v1335, %v1383
    %1385 = vmatmul.bf16.gmra.mxu0 %v306
    %v1386 = vpop.f32.mrf.mxu0
    %v1387 = vadd.f32 %v1338, %v1386
    %v1388 = vpop.f32.mrf.mxu0
    %v1389 = vadd.f32 %v1340, %v1388
    %1390 = vmatmul.bf16.gmra.mxu0 %v309
    %v1391 = vpop.f32.mrf.mxu0
    %v1392 = vadd.f32 %v1343, %v1391
    %v1393 = vpop.f32.mrf.mxu0
    %v1394 = vadd.f32 %v1345, %v1393
    %1395 = vmatmul.bf16.gmra.mxu0 %v312
    %v1396 = vpop.f32.mrf.mxu0
    %v1397 = vadd.f32 %v1348, %v1396
    %v1398 = vpop.f32.mrf.mxu0
    %v1399 = vadd.f32 %v1350, %v1398
    %1400 = vmatmul.bf16.gmra.mxu0 %v315
    %v1401 = vpop.f32.mrf.mxu0
    %v1402 = vadd.f32 %v1353, %v1401
    %v1403 = vpop.f32.mrf.mxu0
    %v1404 = vadd.f32 %v1355, %v1403
    %1405 = vmatmul.bf16.gmra.mxu0 %v318
    %v1406 = vpop.f32.mrf.mxu0
    %v1407 = vadd.f32 %v1358, %v1406
    %v1408 = vpop.f32.mrf.mxu0
    %v1409 = vadd.f32 %v1360, %v1408
    %1410 = vdwg.mxu0
    %v1411 = vmax.f32 %v931, 0.0
    %v1412 = vmax.f32 %v1078, 0.0
    %v1413 = vmax.f32 %v1225, 0.0
    %v1414 = vmax.f32 %v1372, 0.0
    %v1415 = vmax.f32 %v933, 0.0
    %v1416 = vmax.f32 %v1080, 0.0
    %v1417 = vmax.f32 %v1227, 0.0
    %v1418 = vmax.f32 %v1374, 0.0
    %v1419 = vmax.f32 %v936, 0.0
    %v1420 = vmax.f32 %v1083, 0.0
    %v1421 = vmax.f32 %v1230, 0.0
    %v1422 = vmax.f32 %v1377, 0.0
    %v1423 = vmax.f32 %v938, 0.0
    %v1424 = vmax.f32 %v1085, 0.0
    %v1425 = vmax.f32 %v1232, 0.0
    %v1426 = vmax.f32 %v1379, 0.0
    %v1427 = vmax.f32 %v941, 0.0
    %v1428 = vmax.f32 %v1088, 0.0
    %v1429 = vmax.f32 %v1235, 0.0
    %v1430 = vmax.f32 %v1382, 0.0
    %v1431 = vmax.f32 %v943, 0.0
    %v1432 = vmax.f32 %v1090, 0.0
    %v1433 = vmax.f32 %v1237, 0.0
    %v1434 = vmax.f32 %v1384, 0.0
    %v1435 = vmax.f32 %v946, 0.0
    %v1436 = vmax.f32 %v1093, 0.0
    %v1437 = vmax.f32 %v1240, 0.0
    %v1438 = vmax.f32 %v1387, 0.0
    %v1439 = vmax.f32 %v948, 0.0
    %v1440 = vmax.f32 %v1095, 0.0
    %v1441 = vmax.f32 %v1242, 0.0
    %v1442 = vmax.f32 %v1389, 0.0
    %v1443 = vmax.f32 %v951, 0.0
    %v1444 = vmax.f32 %v1098, 0.0
    %v1445 = vmax.f32 %v1245, 0.0
    %v1446 = vmax.f32 %v1392, 0.0
    %v1447 = vmax.f32 %v953, 0.0
    %v1448 = vmax.f32 %v1100, 0.0
    %v1449 = vmax.f32 %v1247, 0.0
    %v1450 = vmax.f32 %v1394, 0.0
    %v1451 = vmax.f32 %v956, 0.0
    %v1452 = vmax.f32 %v1103, 0.0
    %v1453 = vmax.f32 %v1250, 0.0
    %v1454 = vmax.f32 %v1397, 0.0
    %v1455 = vmax.f32 %v958, 0.0
    %v1456 = vmax.f32 %v1105, 0.0
    %v1457 = vmax.f32 %v1252, 0.0
    %v1458 = vmax.f32 %v1399, 0.0
    %v1459 = vmax.f32 %v961, 0.0
    %v1460 = vmax.f32 %v1108, 0.0
    %v1461 = vmax.f32 %v1255, 0.0
    %v1462 = vmax.f32 %v1402, 0.0
    %v1463 = vmax.f32 %v963, 0.0
    %v1464 = vmax.f32 %v1110, 0.0
    %v1465 = vmax.f32 %v1257, 0.0
    %v1466 = vmax.f32 %v1404, 0.0
    %v1467 = vmax.f32 %v966, 0.0
    %v1468 = vmax.f32 %v1113, 0.0
    %v1469 = vmax.f32 %v1260, 0.0
    %v1470 = vmax.f32 %v1407, 0.0
    %v1471 = vmax.f32 %v968, 0.0
    %v1472 = vmax.f32 %v1115, 0.0
    %v1473 = vmax.f32 %v1262, 0.0
    %v1474 = vmax.f32 %v1409, 0.0
    %v1475 = vpack.c.bf16 %v1415, %v1411
    %v1476 = vpack.c.bf16 %v1416, %v1412
    %v1477 = vpack.c.bf16 %v1417, %v1413
    %v1478 = vpack.c.bf16 %v1418, %v1414
    %v1479 = vpack.c.bf16 %v1423, %v1419
    %v1480 = vpack.c.bf16 %v1424, %v1420
    %v1481 = vpack.c.bf16 %v1425, %v1421
    %v1482 = vpack.c.bf16 %v1426, %v1422
    %v1483 = vpack.c.bf16 %v1431, %v1427
    %v1484 = vpack.c.bf16 %v1432, %v1428
    %v1485 = vpack.c.bf16 %v1433, %v1429
    %v1486 = vpack.c.bf16 %v1434, %v1430
    %v1487 = vpack.c.bf16 %v1439, %v1435
    %v1488 = vpack.c.bf16 %v1440, %v1436
    %v1489 = vpack.c.bf16 %v1441, %v1437
    %v1490 = vpack.c.bf16 %v1442, %v1438
    %v1491 = vpack.c.bf16 %v1447, %v1443
    %v1492 = vpack.c.bf16 %v1448, %v1444
    %v1493 = vpack.c.bf16 %v1449, %v1445
    %v1494 = vpack.c.bf16 %v1450, %v1446
    %v1495 = vpack.c.bf16 %v1455, %v1451
    %v1496 = vpack.c.bf16 %v1456, %v1452
    %v1497 = vpack.c.bf16 %v1457, %v1453
    %v1498 = vpack.c.bf16 %v1458, %v1454
    %v1499 = vpack.c.bf16 %v1463, %v1459
    %v1500 = vpack.c.bf16 %v1464, %v1460
    %v1501 = vpack.c.bf16 %v1465, %v1461
    %v1502 = vpack.c.bf16 %v1466, %v1462
    %v1503 = vpack.c.bf16 %v1471, %v1467
    %v1504 = vpack.c.bf16 %v1472, %v1468
    %v1505 = vpack.c.bf16 %v1473, %v1469
    %v1506 = vpack.c.bf16 %v1474, %v1470
    %v1507 = vld [vmem:[#allocation7] sm:$0xf]
    %v1508 = vld [vmem:[#allocation7 + $0x4] sm:$0xf]
    %v1509 = vld [vmem:[#allocation7 + $0x8] sm:$0xf]
    %v1510 = vld [vmem:[#allocation7 + $0xc] sm:$0xf]
    %v1511 = vld [vmem:[#allocation7 + $0x10] sm:$0xf]
    %v1512 = vld [vmem:[#allocation7 + $0x14] sm:$0xf]
    %v1513 = vld [vmem:[#allocation7 + $0x18] sm:$0xf]
    %v1514 = vld [vmem:[#allocation7 + $0x1c] sm:$0xf]
    %v1515 = vld [vmem:[#allocation7 + $0x20] sm:$0xf]
    %v1516 = vld [vmem:[#allocation7 + $0x24] sm:$0xf]
    %v1517 = vld [vmem:[#allocation7 + $0x28] sm:$0xf]
    %v1518 = vld [vmem:[#allocation7 + $0x2c] sm:$0xf]
    %v1519 = vld [vmem:[#allocation7 + $0x30] sm:$0xf]
    %v1520 = vld [vmem:[#allocation7 + $0x34] sm:$0xf]
    %v1521 = vld [vmem:[#allocation7 + $0x38] sm:$0xf]
    %v1522 = vld [vmem:[#allocation7 + $0x3c] sm:$0xf]
    %v1523 = vld [vmem:[#allocation7 + $0x40] sm:$0xf]
    %v1524 = vld [vmem:[#allocation7 + $0x44] sm:$0xf]
    %v1525 = vld [vmem:[#allocation7 + $0x48] sm:$0xf]
    %v1526 = vld [vmem:[#allocation7 + $0x4c] sm:$0xf]
    %v1527 = vld [vmem:[#allocation7 + $0x50] sm:$0xf]
    %v1528 = vld [vmem:[#allocation7 + $0x54] sm:$0xf]
    %v1529 = vld [vmem:[#allocation7 + $0x58] sm:$0xf]
    %v1530 = vld [vmem:[#allocation7 + $0x5c] sm:$0xf]
    %v1531 = vld [vmem:[#allocation7 + $0x60] sm:$0xf]
    %v1532 = vld [vmem:[#allocation7 + $0x64] sm:$0xf]
    %v1533 = vld [vmem:[#allocation7 + $0x68] sm:$0xf]
    %v1534 = vld [vmem:[#allocation7 + $0x6c] sm:$0xf]
    %v1535 = vld [vmem:[#allocation7 + $0x70] sm:$0xf]
    %v1536 = vld [vmem:[#allocation7 + $0x74] sm:$0xf]
    %v1537 = vld [vmem:[#allocation7 + $0x78] sm:$0xf]
    %v1538 = vld [vmem:[#allocation7 + $0x7c] sm:$0xf]
    %v1539 = vld [vmem:[#allocation7 + $0x80] sm:$0xf]
    %v1540 = vld [vmem:[#allocation7 + $0x84] sm:$0xf]
    %v1541 = vld [vmem:[#allocation7 + $0x88] sm:$0xf]
    %v1542 = vld [vmem:[#allocation7 + $0x8c] sm:$0xf]
    %v1543 = vld [vmem:[#allocation7 + $0x90] sm:$0xf]
    %v1544 = vld [vmem:[#allocation7 + $0x94] sm:$0xf]
    %v1545 = vld [vmem:[#allocation7 + $0x98] sm:$0xf]
    %v1546 = vld [vmem:[#allocation7 + $0x9c] sm:$0xf]
    %v1547 = vld [vmem:[#allocation7 + $0xa0] sm:$0xf]
    %v1548 = vld [vmem:[#allocation7 + $0xa4] sm:$0xf]
    %v1549 = vld [vmem:[#allocation7 + $0xa8] sm:$0xf]
    %v1550 = vld [vmem:[#allocation7 + $0xac] sm:$0xf]
    %v1551 = vld [vmem:[#allocation7 + $0xb0] sm:$0xf]
    %v1552 = vld [vmem:[#allocation7 + $0xb4] sm:$0xf]
    %v1553 = vld [vmem:[#allocation7 + $0xb8] sm:$0xf]
    %v1554 = vld [vmem:[#allocation7 + $0xbc] sm:$0xf]
    %v1555 = vld [vmem:[#allocation7 + $0xc0] sm:$0xf]
    %v1556 = vld [vmem:[#allocation7 + $0xc4] sm:$0xf]
    %v1557 = vld [vmem:[#allocation7 + $0xc8] sm:$0xf]
    %v1558 = vld [vmem:[#allocation7 + $0xcc] sm:$0xf]
    %v1559 = vld [vmem:[#allocation7 + $0xd0] sm:$0xf]
    %v1560 = vld [vmem:[#allocation7 + $0xd4] sm:$0xf]
    %v1561 = vld [vmem:[#allocation7 + $0xd8] sm:$0xf]
    %v1562 = vld [vmem:[#allocation7 + $0xdc] sm:$0xf]
    %v1563 = vld [vmem:[#allocation7 + $0xe0] sm:$0xf]
    %v1564 = vld [vmem:[#allocation7 + $0xe4] sm:$0xf]
    %v1565 = vld [vmem:[#allocation7 + $0xe8] sm:$0xf]
    %v1566 = vld [vmem:[#allocation7 + $0xec] sm:$0xf]
    %v1567 = vld [vmem:[#allocation7 + $0xf0] sm:$0xf]
    %v1568 = vld [vmem:[#allocation7 + $0xf4] sm:$0xf]
    %v1569 = vld [vmem:[#allocation7 + $0xf8] sm:$0xf]
    %v1570 = vld [vmem:[#allocation7 + $0xfc] sm:$0xf]
    %v1571 = vld [vmem:[%s3] sm:$0x1]
    %v1573 = vperm.slane %v1571, 0
    %v1639 = vunpack.c.l.b16 %v1507
    %v1640 = vunpack.c.l.b16 %v1508
    %v1641 = vunpack.c.l.b16 %v1509
    %v1642 = vunpack.c.l.b16 %v1510
    %v1643 = vunpack.c.l.b16 %v1511
    %v1644 = vunpack.c.l.b16 %v1512
    %v1645 = vunpack.c.l.b16 %v1513
    %v1646 = vunpack.c.l.b16 %v1514
    %v1647 = vunpack.c.l.b16 %v1515
    %v1648 = vunpack.c.l.b16 %v1516
    %v1649 = vunpack.c.l.b16 %v1517
    %v1650 = vunpack.c.l.b16 %v1518
    %v1651 = vunpack.c.l.b16 %v1519
    %v1652 = vunpack.c.l.b16 %v1520
    %v1653 = vunpack.c.l.b16 %v1521
    %v1654 = vunpack.c.l.b16 %v1522
    %v1655 = vunpack.c.l.b16 %v1523
    %v1656 = vunpack.c.l.b16 %v1524
    %v1657 = vunpack.c.l.b16 %v1525
    %v1658 = vunpack.c.l.b16 %v1526
    %v1659 = vunpack.c.l.b16 %v1527
    %v1660 = vunpack.c.l.b16 %v1528
    %v1661 = vunpack.c.l.b16 %v1529
    %v1662 = vunpack.c.l.b16 %v1530
    %v1663 = vunpack.c.l.b16 %v1531
    %v1664 = vunpack.c.l.b16 %v1532
    %v1665 = vunpack.c.l.b16 %v1533
    %v1666 = vunpack.c.l.b16 %v1534
    %v1667 = vunpack.c.l.b16 %v1535
    %v1668 = vunpack.c.l.b16 %v1536
    %v1669 = vunpack.c.l.b16 %v1537
    %v1670 = vunpack.c.l.b16 %v1538
    %v1671 = vunpack.c.l.b16 %v1539
    %v1672 = vunpack.c.l.b16 %v1540
    %v1673 = vunpack.c.l.b16 %v1541
    %v1674 = vunpack.c.l.b16 %v1542
    %v1675 = vunpack.c.l.b16 %v1543
    %v1676 = vunpack.c.l.b16 %v1544
    %v1677 = vunpack.c.l.b16 %v1545
    %v1678 = vunpack.c.l.b16 %v1546
    %v1679 = vunpack.c.l.b16 %v1547
    %v1680 = vunpack.c.l.b16 %v1548
    %v1681 = vunpack.c.l.b16 %v1549
    %v1682 = vunpack.c.l.b16 %v1550
    %v1683 = vunpack.c.l.b16 %v1551
    %v1684 = vunpack.c.l.b16 %v1552
    %v1685 = vunpack.c.l.b16 %v1553
    %v1686 = vunpack.c.l.b16 %v1554
    %v1687 = vunpack.c.l.b16 %v1555
    %v1688 = vunpack.c.l.b16 %v1556
    %v1689 = vunpack.c.l.b16 %v1557
    %v1690 = vunpack.c.l.b16 %v1558
    %v1691 = vunpack.c.l.b16 %v1559
    %v1692 = vunpack.c.l.b16 %v1560
    %v1693 = vunpack.c.l.b16 %v1561
    %v1694 = vunpack.c.l.b16 %v1562
    %v1695 = vunpack.c.l.b16 %v1563
    %v1696 = vunpack.c.l.b16 %v1564
    %v1697 = vunpack.c.l.b16 %v1565
    %v1698 = vunpack.c.l.b16 %v1566
    %v1699 = vunpack.c.l.b16 %v1567
    %v1700 = vunpack.c.l.b16 %v1568
    %v1701 = vunpack.c.l.b16 %v1569
    %v1702 = vunpack.c.l.b16 %v1570
    %v1703 = vpack.c.b16 %v1640, %v1639
    %v1704 = vpack.c.b16 %v1642, %v1641
    %v1705 = vpack.c.b16 %v1644, %v1643
    %v1706 = vpack.c.b16 %v1646, %v1645
    %v1707 = vpack.c.b16 %v1648, %v1647
    %v1708 = vpack.c.b16 %v1650, %v1649
    %v1709 = vpack.c.b16 %v1652, %v1651
    %v1710 = vpack.c.b16 %v1654, %v1653
    %v1711 = vpack.c.b16 %v1656, %v1655
    %v1712 = vpack.c.b16 %v1658, %v1657
    %v1713 = vpack.c.b16 %v1660, %v1659
    %v1714 = vpack.c.b16 %v1662, %v1661
    %v1715 = vpack.c.b16 %v1664, %v1663
    %v1716 = vpack.c.b16 %v1666, %v1665
    %v1717 = vpack.c.b16 %v1668, %v1667
    %v1718 = vpack.c.b16 %v1670, %v1669
    %v1719 = vpack.c.b16 %v1672, %v1671
    %v1720 = vpack.c.b16 %v1674, %v1673
    %v1721 = vpack.c.b16 %v1676, %v1675
    %v1722 = vpack.c.b16 %v1678, %v1677
    %v1723 = vpack.c.b16 %v1680, %v1679
    %v1724 = vpack.c.b16 %v1682, %v1681
    %v1725 = vpack.c.b16 %v1684, %v1683
    %v1726 = vpack.c.b16 %v1686, %v1685
    %v1727 = vpack.c.b16 %v1688, %v1687
    %v1728 = vpack.c.b16 %v1690, %v1689
    %v1729 = vpack.c.b16 %v1692, %v1691
    %v1730 = vpack.c.b16 %v1694, %v1693
    %v1731 = vpack.c.b16 %v1696, %v1695
    %v1732 = vpack.c.b16 %v1698, %v1697
    %v1733 = vpack.c.b16 %v1700, %v1699
    %v1734 = vpack.c.b16 %v1702, %v1701
    %1767 = vmatpush.bf16.msra.mxu0 %v1710
    %1768 = vmatpush.bf16.msra.mxu0 %v1709
    %1769 = vmatpush.bf16.msra.mxu0 %v1708
    %1770 = vmatpush.bf16.msra.mxu0 %v1707
    %1771 = vmatpush.bf16.msra.mxu0 %v1706
    %1772 = vmatpush.bf16.msra.mxu0 %v1705
    %1773 = vmatpush.bf16.msra.mxu0 %v1704
    %1774 = vmatpush.bf16.msra.mxu0 %v1703
    %1775 = vmatmul.bf16.gmra.mxu0 %v1475
    %v1776 = vpop.f32.mrf.mxu0
    %v1777 = vadd.f32 %v1573, %v1776
    %v1778 = vpop.f32.mrf.mxu0
    %v1779 = vadd.f32 %v1573, %v1778
    %1780 = vmatmul.bf16.gmra.mxu0 %v1479
    %v1781 = vpop.f32.mrf.mxu0
    %v1782 = vadd.f32 %v1573, %v1781
    %v1783 = vpop.f32.mrf.mxu0
    %v1784 = vadd.f32 %v1573, %v1783
    %1785 = vmatmul.bf16.gmra.mxu0 %v1483
    %v1786 = vpop.f32.mrf.mxu0
    %v1787 = vadd.f32 %v1573, %v1786
    %v1788 = vpop.f32.mrf.mxu0
    %v1789 = vadd.f32 %v1573, %v1788
    %1790 = vmatmul.bf16.gmra.mxu0 %v1487
    %v1791 = vpop.f32.mrf.mxu0
    %v1792 = vadd.f32 %v1573, %v1791
    %v1793 = vpop.f32.mrf.mxu0
    %v1794 = vadd.f32 %v1573, %v1793
    %1795 = vmatmul.bf16.gmra.mxu0 %v1491
    %v1796 = vpop.f32.mrf.mxu0
    %v1797 = vadd.f32 %v1573, %v1796
    %v1798 = vpop.f32.mrf.mxu0
    %v1799 = vadd.f32 %v1573, %v1798
    %1800 = vmatmul.bf16.gmra.mxu0 %v1495
    %v1801 = vpop.f32.mrf.mxu0
    %v1802 = vadd.f32 %v1573, %v1801
    %v1803 = vpop.f32.mrf.mxu0
    %v1804 = vadd.f32 %v1573, %v1803
    %1805 = vmatmul.bf16.gmra.mxu0 %v1499
    %v1806 = vpop.f32.mrf.mxu0
    %v1807 = vadd.f32 %v1573, %v1806
    %v1808 = vpop.f32.mrf.mxu0
    %v1809 = vadd.f32 %v1573, %v1808
    %1810 = vmatmul.bf16.gmra.mxu0 %v1503
    %v1811 = vpop.f32.mrf.mxu0
    %v1812 = vadd.f32 %v1573, %v1811
    %v1813 = vpop.f32.mrf.mxu0
    %v1814 = vadd.f32 %v1573, %v1813
    %1815 = vdwg.mxu0
    %1816 = vmatpush.bf16.msra.mxu0 %v1718
    %1817 = vmatpush.bf16.msra.mxu0 %v1717
    %1818 = vmatpush.bf16.msra.mxu0 %v1716
    %1819 = vmatpush.bf16.msra.mxu0 %v1715
    %1820 = vmatpush.bf16.msra.mxu0 %v1714
    %1821 = vmatpush.bf16.msra.mxu0 %v1713
    %1822 = vmatpush.bf16.msra.mxu0 %v1712
    %1823 = vmatpush.bf16.msra.mxu0 %v1711
    %1824 = vmatmul.bf16.gmra.mxu0 %v1476
    %v1825 = vpop.f32.mrf.mxu0
    %v1826 = vadd.f32 %v1777, %v1825
    %v1827 = vpop.f32.mrf.mxu0
    %v1828 = vadd.f32 %v1779, %v1827
    %1829 = vmatmul.bf16.gmra.mxu0 %v1480
    %v1830 = vpop.f32.mrf.mxu0
    %v1831 = vadd.f32 %v1782, %v1830
    %v1832 = vpop.f32.mrf.mxu0
    %v1833 = vadd.f32 %v1784, %v1832
    %1834 = vmatmul.bf16.gmra.mxu0 %v1484
    %v1835 = vpop.f32.mrf.mxu0
    %v1836 = vadd.f32 %v1787, %v1835
    %v1837 = vpop.f32.mrf.mxu0
    %v1838 = vadd.f32 %v1789, %v1837
    %1839 = vmatmul.bf16.gmra.mxu0 %v1488
    %v1840 = vpop.f32.mrf.mxu0
    %v1841 = vadd.f32 %v1792, %v1840
    %v1842 = vpop.f32.mrf.mxu0
    %v1843 = vadd.f32 %v1794, %v1842
    %1844 = vmatmul.bf16.gmra.mxu0 %v1492
    %v1845 = vpop.f32.mrf.mxu0
    %v1846 = vadd.f32 %v1797, %v1845
    %v1847 = vpop.f32.mrf.mxu0
    %v1848 = vadd.f32 %v1799, %v1847
    %1849 = vmatmul.bf16.gmra.mxu0 %v1496
    %v1850 = vpop.f32.mrf.mxu0
    %v1851 = vadd.f32 %v1802, %v1850
    %v1852 = vpop.f32.mrf.mxu0
    %v1853 = vadd.f32 %v1804, %v1852
    %1854 = vmatmul.bf16.gmra.mxu0 %v1500
    %v1855 = vpop.f32.mrf.mxu0
    %v1856 = vadd.f32 %v1807, %v1855
    %v1857 = vpop.f32.mrf.mxu0
    %v1858 = vadd.f32 %v1809, %v1857
    %1859 = vmatmul.bf16.gmra.mxu0 %v1504
    %v1860 = vpop.f32.mrf.mxu0
    %v1861 = vadd.f32 %v1812, %v1860
    %v1862 = vpop.f32.mrf.mxu0
    %v1863 = vadd.f32 %v1814, %v1862
    %1864 = vdwg.mxu0
    %1865 = vmatpush.bf16.msra.mxu0 %v1726
    %1866 = vmatpush.bf16.msra.mxu0 %v1725
    %1867 = vmatpush.bf16.msra.mxu0 %v1724
    %1868 = vmatpush.bf16.msra.mxu0 %v1723
    %1869 = vmatpush.bf16.msra.mxu0 %v1722
    %1870 = vmatpush.bf16.msra.mxu0 %v1721
    %1871 = vmatpush.bf16.msra.mxu0 %v1720
    %1872 = vmatpush.bf16.msra.mxu0 %v1719
    %1873 = vmatmul.bf16.gmra.mxu0 %v1477
    %v1874 = vpop.f32.mrf.mxu0
    %v1875 = vadd.f32 %v1826, %v1874
    %v1876 = vpop.f32.mrf.mxu0
    %v1877 = vadd.f32 %v1828, %v1876
    %1878 = vmatmul.bf16.gmra.mxu0 %v1481
    %v1879 = vpop.f32.mrf.mxu0
    %v1880 = vadd.f32 %v1831, %v1879
    %v1881 = vpop.f32.mrf.mxu0
    %v1882 = vadd.f32 %v1833, %v1881
    %1883 = vmatmul.bf16.gmra.mxu0 %v1485
    %v1884 = vpop.f32.mrf.mxu0
    %v1885 = vadd.f32 %v1836, %v1884
    %v1886 = vpop.f32.mrf.mxu0
    %v1887 = vadd.f32 %v1838, %v1886
    %1888 = vmatmul.bf16.gmra.mxu0 %v1489
    %v1889 = vpop.f32.mrf.mxu0
    %v1890 = vadd.f32 %v1841, %v1889
    %v1891 = vpop.f32.mrf.mxu0
    %v1892 = vadd.f32 %v1843, %v1891
    %1893 = vmatmul.bf16.gmra.mxu0 %v1493
    %v1894 = vpop.f32.mrf.mxu0
    %v1895 = vadd.f32 %v1846, %v1894
    %v1896 = vpop.f32.mrf.mxu0
    %v1897 = vadd.f32 %v1848, %v1896
    %1898 = vmatmul.bf16.gmra.mxu0 %v1497
    %v1899 = vpop.f32.mrf.mxu0
    %v1900 = vadd.f32 %v1851, %v1899
    %v1901 = vpop.f32.mrf.mxu0
    %v1902 = vadd.f32 %v1853, %v1901
    %1903 = vmatmul.bf16.gmra.mxu0 %v1501
    %v1904 = vpop.f32.mrf.mxu0
    %v1905 = vadd.f32 %v1856, %v1904
    %v1906 = vpop.f32.mrf.mxu0
    %v1907 = vadd.f32 %v1858, %v1906
    %1908 = vmatmul.bf16.gmra.mxu0 %v1505
    %v1909 = vpop.f32.mrf.mxu0
    %v1910 = vadd.f32 %v1861, %v1909
    %v1911 = vpop.f32.mrf.mxu0
    %v1912 = vadd.f32 %v1863, %v1911
    %1913 = vdwg.mxu0
    %1914 = vmatpush.bf16.msra.mxu0 %v1734
    %1915 = vmatpush.bf16.msra.mxu0 %v1733
    %1916 = vmatpush.bf16.msra.mxu0 %v1732
    %1917 = vmatpush.bf16.msra.mxu0 %v1731
    %1918 = vmatpush.bf16.msra.mxu0 %v1730
    %1919 = vmatpush.bf16.msra.mxu0 %v1729
    %1920 = vmatpush.bf16.msra.mxu0 %v1728
    %1921 = vmatpush.bf16.msra.mxu0 %v1727
    %1922 = vmatmul.bf16.gmra.mxu0 %v1478
    %v1923 = vpop.f32.mrf.mxu0
    %v1924 = vadd.f32 %v1875, %v1923
    %v1925 = vpop.f32.mrf.mxu0
    %v1926 = vadd.f32 %v1877, %v1925
    %1927 = vmatmul.bf16.gmra.mxu0 %v1482
    %v1928 = vpop.f32.mrf.mxu0
    %v1929 = vadd.f32 %v1880, %v1928
    %v1930 = vpop.f32.mrf.mxu0
    %v1931 = vadd.f32 %v1882, %v1930
    %1932 = vmatmul.bf16.gmra.mxu0 %v1486
    %v1933 = vpop.f32.mrf.mxu0
    %v1934 = vadd.f32 %v1885, %v1933
    %v1935 = vpop.f32.mrf.mxu0
    %v1936 = vadd.f32 %v1887, %v1935
    %1937 = vmatmul.bf16.gmra.mxu0 %v1490
    %v1938 = vpop.f32.mrf.mxu0
    %v1939 = vadd.f32 %v1890, %v1938
    %v1940 = vpop.f32.mrf.mxu0
    %v1941 = vadd.f32 %v1892, %v1940
    %1942 = vmatmul.bf16.gmra.mxu0 %v1494
    %v1943 = vpop.f32.mrf.mxu0
    %v1944 = vadd.f32 %v1895, %v1943
    %v1945 = vpop.f32.mrf.mxu0
    %v1946 = vadd.f32 %v1897, %v1945
    %1947 = vmatmul.bf16.gmra.mxu0 %v1498
    %v1948 = vpop.f32.mrf.mxu0
    %v1949 = vadd.f32 %v1900, %v1948
    %v1950 = vpop.f32.mrf.mxu0
    %v1951 = vadd.f32 %v1902, %v1950
    %1952 = vmatmul.bf16.gmra.mxu0 %v1502
    %v1953 = vpop.f32.mrf.mxu0
    %v1954 = vadd.f32 %v1905, %v1953
    %v1955 = vpop.f32.mrf.mxu0
    %v1956 = vadd.f32 %v1907, %v1955
    %1957 = vmatmul.bf16.gmra.mxu0 %v1506
    %v1958 = vpop.f32.mrf.mxu0
    %v1959 = vadd.f32 %v1910, %v1958
    %v1960 = vpop.f32.mrf.mxu0
    %v1961 = vadd.f32 %v1912, %v1960
    %1962 = vdwg.mxu0
    %v1963 = vmax.f32 %v1924, 0.0
    %v1964 = vmax.f32 %v1926, 0.0
    %v1965 = vmax.f32 %v1929, 0.0
    %v1966 = vmax.f32 %v1931, 0.0
    %v1967 = vmax.f32 %v1934, 0.0
    %v1968 = vmax.f32 %v1936, 0.0
    %v1969 = vmax.f32 %v1939, 0.0
    %v1970 = vmax.f32 %v1941, 0.0
    %v1971 = vmax.f32 %v1944, 0.0
    %v1972 = vmax.f32 %v1946, 0.0
    %v1973 = vmax.f32 %v1949, 0.0
    %v1974 = vmax.f32 %v1951, 0.0
    %v1975 = vmax.f32 %v1954, 0.0
    %v1976 = vmax.f32 %v1956, 0.0
    %v1977 = vmax.f32 %v1959, 0.0
    %v1978 = vmax.f32 %v1961, 0.0
    %v1979 = vpack.c.bf16 %v1964, %v1963
    %v1980 = vpack.c.bf16 %v1966, %v1965
    %v1981 = vpack.c.bf16 %v1968, %v1967
    %v1982 = vpack.c.bf16 %v1970, %v1969
    %v1983 = vpack.c.bf16 %v1972, %v1971
    %v1984 = vpack.c.bf16 %v1974, %v1973
    %v1985 = vpack.c.bf16 %v1976, %v1975
    %v1986 = vpack.c.bf16 %v1978, %v1977
    %v1987 = vld [vmem:[#allocation8] sm:$0xf]
    %v1988 = vld [vmem:[#allocation8 + $0x4] sm:$0xf]
    %v1989 = vld [vmem:[#allocation8 + $0x8] sm:$0xf]
    %v1990 = vld [vmem:[#allocation8 + $0xc] sm:$0xf]
    %v1991 = vld [vmem:[#allocation8 + $0x10] sm:$0xf]
    %v1992 = vld [vmem:[#allocation8 + $0x14] sm:$0xf]
    %v1993 = vld [vmem:[#allocation8 + $0x18] sm:$0xf]
    %v1994 = vld [vmem:[#allocation8 + $0x1c] sm:$0xf]
    %v1995 = vld [vmem:[#allocation8 + $0x20] sm:$0xf]
    %v1996 = vld [vmem:[#allocation8 + $0x24] sm:$0xf]
    %v1997 = vld [vmem:[#allocation8 + $0x28] sm:$0xf]
    %v1998 = vld [vmem:[#allocation8 + $0x2c] sm:$0xf]
    %v1999 = vld [vmem:[#allocation8 + $0x30] sm:$0xf]
    %v2000 = vld [vmem:[#allocation8 + $0x34] sm:$0xf]
    %v2001 = vld [vmem:[#allocation8 + $0x38] sm:$0xf]
    %v2002 = vld [vmem:[#allocation8 + $0x3c] sm:$0xf]
    %v2003 = vld [vmem:[%s5] sm:$0x1]
    %v2005 = vperm.slane %v2003, 0
    %v2023 = vunpack.c.l.b16 %v1987
    %v2024 = vunpack.c.l.b16 %v1988
    %v2025 = vunpack.c.l.b16 %v1989
    %v2026 = vunpack.c.l.b16 %v1990
    %v2027 = vunpack.c.l.b16 %v1991
    %v2028 = vunpack.c.l.b16 %v1992
    %v2029 = vunpack.c.l.b16 %v1993
    %v2030 = vunpack.c.l.b16 %v1994
    %v2031 = vunpack.c.l.b16 %v1995
    %v2032 = vunpack.c.l.b16 %v1996
    %v2033 = vunpack.c.l.b16 %v1997
    %v2034 = vunpack.c.l.b16 %v1998
    %v2035 = vunpack.c.l.b16 %v1999
    %v2036 = vunpack.c.l.b16 %v2000
    %v2037 = vunpack.c.l.b16 %v2001
    %v2038 = vunpack.c.l.b16 %v2002
    %v2039 = vpack.c.b16 %v2024, %v2023
    %v2040 = vpack.c.b16 %v2026, %v2025
    %v2041 = vpack.c.b16 %v2028, %v2027
    %v2042 = vpack.c.b16 %v2030, %v2029
    %v2043 = vpack.c.b16 %v2032, %v2031
    %v2044 = vpack.c.b16 %v2034, %v2033
    %v2045 = vpack.c.b16 %v2036, %v2035
    %v2046 = vpack.c.b16 %v2038, %v2037
    %2055 = vmatpush.bf16.msra.mxu0 %v2046
    %2056 = vmatpush.bf16.msra.mxu0 %v2045
    %2057 = vmatpush.bf16.msra.mxu0 %v2044
    %2058 = vmatpush.bf16.msra.mxu0 %v2043
    %2059 = vmatpush.bf16.msra.mxu0 %v2042
    %2060 = vmatpush.bf16.msra.mxu0 %v2041
    %2061 = vmatpush.bf16.msra.mxu0 %v2040
    %2062 = vmatpush.bf16.msra.mxu0 %v2039
    %2063 = vmatmul.bf16.gmra.mxu0 %v1979
    %v2064 = vpop.f32.mrf.mxu0
    %v2065 = vadd.f32 %v2005, %v2064
    %v2066 = vpop.f32.mrf.mxu0
    %v2067 = vadd.f32 %v2005, %v2066
    %2068 = vmatmul.bf16.gmra.mxu0 %v1980
    %v2069 = vpop.f32.mrf.mxu0
    %v2070 = vadd.f32 %v2005, %v2069
    %v2071 = vpop.f32.mrf.mxu0
    %v2072 = vadd.f32 %v2005, %v2071
    %2073 = vmatmul.bf16.gmra.mxu0 %v1981
    %v2074 = vpop.f32.mrf.mxu0
    %v2075 = vadd.f32 %v2005, %v2074
    %v2076 = vpop.f32.mrf.mxu0
    %v2077 = vadd.f32 %v2005, %v2076
    %2078 = vmatmul.bf16.gmra.mxu0 %v1982
    %v2079 = vpop.f32.mrf.mxu0
    %v2080 = vadd.f32 %v2005, %v2079
    %v2081 = vpop.f32.mrf.mxu0
    %v2082 = vadd.f32 %v2005, %v2081
    %2083 = vmatmul.bf16.gmra.mxu0 %v1983
    %v2084 = vpop.f32.mrf.mxu0
    %v2085 = vadd.f32 %v2005, %v2084
    %v2086 = vpop.f32.mrf.mxu0
    %v2087 = vadd.f32 %v2005, %v2086
    %2088 = vmatmul.bf16.gmra.mxu0 %v1984
    %v2089 = vpop.f32.mrf.mxu0
    %v2090 = vadd.f32 %v2005, %v2089
    %v2091 = vpop.f32.mrf.mxu0
    %v2092 = vadd.f32 %v2005, %v2091
    %2093 = vmatmul.bf16.gmra.mxu0 %v1985
    %v2094 = vpop.f32.mrf.mxu0
    %v2095 = vadd.f32 %v2005, %v2094
    %v2096 = vpop.f32.mrf.mxu0
    %v2097 = vadd.f32 %v2005, %v2096
    %2098 = vmatmul.bf16.gmra.mxu0 %v1986
    %v2099 = vpop.f32.mrf.mxu0
    %v2100 = vadd.f32 %v2005, %v2099
    %v2101 = vpop.f32.mrf.mxu0
    %v2102 = vadd.f32 %v2005, %v2101
    %2103 = vdwg.mxu0
    %v2104 = vlaneseq
    %v2105 = vand.u32 %v2104, 127
    %vm2106 = vcmp.lt.s32.totalorder %v2105, 2
    %v2107 = vsel %vm2106, %v2065, -inf
    %v2108 = vsel %vm2106, %v2067, -inf
    %v2109 = vsel %vm2106, %v2070, -inf
    %v2110 = vsel %vm2106, %v2072, -inf
    %v2111 = vsel %vm2106, %v2075, -inf
    %v2112 = vsel %vm2106, %v2077, -inf
    %v2113 = vsel %vm2106, %v2080, -inf
    %v2114 = vsel %vm2106, %v2082, -inf
    %v2115 = vsel %vm2106, %v2085, -inf
    %v2116 = vsel %vm2106, %v2087, -inf
    %v2117 = vsel %vm2106, %v2090, -inf
    %v2118 = vsel %vm2106, %v2092, -inf
    %v2119 = vsel %vm2106, %v2095, -inf
    %v2120 = vsel %vm2106, %v2097, -inf
    %v2121 = vsel %vm2106, %v2100, -inf
    %v2122 = vsel %vm2106, %v2102, -inf
    %2123 = vmax.xlane.f32.xlu0 %v2107
    %v2124 = vpop.xlane.xlu0 %2123
    %2125 = vmax.xlane.f32.xlu0 %v2108
    %v2126 = vpop.xlane.xlu0 %2125
    %2127 = vmax.xlane.f32.xlu0 %v2109
    %v2128 = vpop.xlane.xlu0 %2127
    %2129 = vmax.xlane.f32.xlu0 %v2110
    %v2130 = vpop.xlane.xlu0 %2129
    %2131 = vmax.xlane.f32.xlu0 %v2111
    %v2132 = vpop.xlane.xlu0 %2131
    %2133 = vmax.xlane.f32.xlu0 %v2112
    %v2134 = vpop.xlane.xlu0 %2133
    %2135 = vmax.xlane.f32.xlu0 %v2113
    %v2136 = vpop.xlane.xlu0 %2135
    %2137 = vmax.xlane.f32.xlu0 %v2114
    %v2138 = vpop.xlane.xlu0 %2137
    %2139 = vmax.xlane.f32.xlu0 %v2115
    %v2140 = vpop.xlane.xlu0 %2139
    %2141 = vmax.xlane.f32.xlu0 %v2116
    %v2142 = vpop.xlane.xlu0 %2141
    %2143 = vmax.xlane.f32.xlu0 %v2117
    %v2144 = vpop.xlane.xlu0 %2143
    %2145 = vmax.xlane.f32.xlu0 %v2118
    %v2146 = vpop.xlane.xlu0 %2145
    %2147 = vmax.xlane.f32.xlu0 %v2119
    %v2148 = vpop.xlane.xlu0 %2147
    %2149 = vmax.xlane.f32.xlu0 %v2120
    %v2150 = vpop.xlane.xlu0 %2149
    %2151 = vmax.xlane.f32.xlu0 %v2121
    %v2152 = vpop.xlane.xlu0 %2151
    %2153 = vmax.xlane.f32.xlu0 %v2122
    %v2154 = vpop.xlane.xlu0 %2153
    %v2155 = vsub.f32 %v2107, %v2124
    %v2156 = vsub.f32 %v2108, %v2126
    %v2157 = vsub.f32 %v2109, %v2128
    %v2158 = vsub.f32 %v2110, %v2130
    %v2159 = vsub.f32 %v2111, %v2132
    %v2160 = vsub.f32 %v2112, %v2134
    %v2161 = vsub.f32 %v2113, %v2136
    %v2162 = vsub.f32 %v2114, %v2138
    %v2163 = vsub.f32 %v2115, %v2140
    %v2164 = vsub.f32 %v2116, %v2142
    %v2165 = vsub.f32 %v2117, %v2144
    %v2166 = vsub.f32 %v2118, %v2146
    %v2167 = vsub.f32 %v2119, %v2148
    %v2168 = vsub.f32 %v2120, %v2150
    %v2169 = vsub.f32 %v2121, %v2152
    %v2170 = vsub.f32 %v2122, %v2154
    %v2171 = vmul.f32 %v2155, 1.442695
    %v2172 = vpow.pop %v2171
    %v2173 = vmul.f32 %v2156, 1.442695
    %v2174 = vpow.pop %v2173
    %v2175 = vmul.f32 %v2157, 1.442695
    %v2176 = vpow.pop %v2175
    %v2177 = vmul.f32 %v2158, 1.442695
    %v2178 = vpow.pop %v2177
    %v2179 = vmul.f32 %v2159, 1.442695
    %v2180 = vpow.pop %v2179
    %v2181 = vmul.f32 %v2160, 1.442695
    %v2182 = vpow.pop %v2181
    %v2183 = vmul.f32 %v2161, 1.442695
    %v2184 = vpow.pop %v2183
    %v2185 = vmul.f32 %v2162, 1.442695
    %v2186 = vpow.pop %v2185
    %v2187 = vmul.f32 %v2163, 1.442695
    %v2188 = vpow.pop %v2187
    %v2189 = vmul.f32 %v2164, 1.442695
    %v2190 = vpow.pop %v2189
    %v2191 = vmul.f32 %v2165, 1.442695
    %v2192 = vpow.pop %v2191
    %v2193 = vmul.f32 %v2166, 1.442695
    %v2194 = vpow.pop %v2193
    %v2195 = vmul.f32 %v2167, 1.442695
    %v2196 = vpow.pop %v2195
    %v2197 = vmul.f32 %v2168, 1.442695
    %v2198 = vpow.pop %v2197
    %v2199 = vmul.f32 %v2169, 1.442695
    %v2200 = vpow.pop %v2199
    %v2201 = vmul.f32 %v2170, 1.442695
    %v2202 = vpow.pop %v2201
    %2203 = vadd.xlane.f32.xlu0 %v2172
    %v2204 = vpop.xlane.xlu0 %2203
    %2205 = vadd.xlane.f32.xlu0 %v2174
    %v2206 = vpop.xlane.xlu0 %2205
    %2207 = vadd.xlane.f32.xlu0 %v2176
    %v2208 = vpop.xlane.xlu0 %2207
    %2209 = vadd.xlane.f32.xlu0 %v2178
    %v2210 = vpop.xlane.xlu0 %2209
    %2211 = vadd.xlane.f32.xlu0 %v2180
    %v2212 = vpop.xlane.xlu0 %2211
    %2213 = vadd.xlane.f32.xlu0 %v2182
    %v2214 = vpop.xlane.xlu0 %2213
    %2215 = vadd.xlane.f32.xlu0 %v2184
    %v2216 = vpop.xlane.xlu0 %2215
    %2217 = vadd.xlane.f32.xlu0 %v2186
    %v2218 = vpop.xlane.xlu0 %2217
    %2219 = vadd.xlane.f32.xlu0 %v2188
    %v2220 = vpop.xlane.xlu0 %2219
    %2221 = vadd.xlane.f32.xlu0 %v2190
    %v2222 = vpop.xlane.xlu0 %2221
    %2223 = vadd.xlane.f32.xlu0 %v2192
    %v2224 = vpop.xlane.xlu0 %2223
    %2225 = vadd.xlane.f32.xlu0 %v2194
    %v2226 = vpop.xlane.xlu0 %2225
    %2227 = vadd.xlane.f32.xlu0 %v2196
    %v2228 = vpop.xlane.xlu0 %2227
    %2229 = vadd.xlane.f32.xlu0 %v2198
    %v2230 = vpop.xlane.xlu0 %2229
    %2231 = vadd.xlane.f32.xlu0 %v2200
    %v2232 = vpop.xlane.xlu0 %2231
    %2233 = vadd.xlane.f32.xlu0 %v2202
    %v2234 = vpop.xlane.xlu0 %2233
    %v2235 = vrcp.pop %v2204
    %v2236 = vrcp.pop %v2206
    %v2237 = vrcp.pop %v2208
    %v2238 = vrcp.pop %v2210
    %v2239 = vrcp.pop %v2212
    %v2240 = vrcp.pop %v2214
    %v2241 = vrcp.pop %v2216
    %v2242 = vrcp.pop %v2218
    %v2243 = vrcp.pop %v2220
    %v2244 = vrcp.pop %v2222
    %v2245 = vrcp.pop %v2224
    %v2246 = vrcp.pop %v2226
    %v2247 = vrcp.pop %v2228
    %v2248 = vrcp.pop %v2230
    %v2249 = vrcp.pop %v2232
    %v2250 = vrcp.pop %v2234
    %v2251 = vmul.f32 %v2172, %v2235
    %v2252 = vmul.f32 %v2174, %v2236
    %v2253 = vmul.f32 %v2176, %v2237
    %v2254 = vmul.f32 %v2178, %v2238
    %v2255 = vmul.f32 %v2180, %v2239
    %v2256 = vmul.f32 %v2182, %v2240
    %v2257 = vmul.f32 %v2184, %v2241
    %v2258 = vmul.f32 %v2186, %v2242
    %v2259 = vmul.f32 %v2188, %v2243
    %v2260 = vmul.f32 %v2190, %v2244
    %v2261 = vmul.f32 %v2192, %v2245
    %v2262 = vmul.f32 %v2194, %v2246
    %v2263 = vmul.f32 %v2196, %v2247
    %v2264 = vmul.f32 %v2198, %v2248
    %v2265 = vmul.f32 %v2200, %v2249
    %v2266 = vmul.f32 %v2202, %v2250
    %2267 = vst [vmem:[#allocation10] sm:$0xff] %v2251
    %2268 = vst [vmem:[#allocation10 + $0x8] sm:$0xff] %v2252
    %2269 = vst [vmem:[#allocation10 + $0x10] sm:$0xff] %v2253
    %2270 = vst [vmem:[#allocation10 + $0x18] sm:$0xff] %v2254
    %2271 = vst [vmem:[#allocation10 + $0x20] sm:$0xff] %v2255
    %2272 = vst [vmem:[#allocation10 + $0x28] sm:$0xff] %v2256
    %2273 = vst [vmem:[#allocation10 + $0x30] sm:$0xff] %v2257
    %2274 = vst [vmem:[#allocation10 + $0x38] sm:$0xff] %v2258
    %2275 = vst [vmem:[#allocation10 + $0x40] sm:$0xff] %v2259
    %2276 = vst [vmem:[#allocation10 + $0x48] sm:$0xff] %v2260
    %2277 = vst [vmem:[#allocation10 + $0x50] sm:$0xff] %v2261
    %2278 = vst [vmem:[#allocation10 + $0x58] sm:$0xff] %v2262
    %2279 = vst [vmem:[#allocation10 + $0x60] sm:$0xff] %v2263
    %2280 = vst [vmem:[#allocation10 + $0x68] sm:$0xff] %v2264
    %2281 = vst [vmem:[#allocation10 + $0x70] sm:$0xff] %v2265
    %2282 = vst [vmem:[#allocation10 + $0x78] sm:$0xff] %v2266
    // Predicated region
    $region42: #{tpu_custom_call.1} parent=1 // pred_check
      _
    $region43: #{tpu_custom_call.1} parent=1 // pred_check_branch
      %2284 = sbr.rel (0) target = $region45
    $region44: #{tpu_custom_call.1} parent=1 // pred_region
      %2286 = vsyncadd [#allocation4], 0
      %s2287 = sshll.u32 [#allocation10], 4
      %s2288 = int_to_ptr.vmem [resolvable:$true] %s2287
      %s2289 = sshll.u32 %s6, 4
      %s2290 = int_to_ptr.hbm [resolvable:$true] %s2289
      %2295 = dma.vmem_to_hbm [thread:$0]  %s2288, 2048, %s2290, [#allocation4], 128, 128, 8
    $region45: #{tpu_custom_call.1} parent=1 // pred_fallthru
      _
    // Predicated region
    $region46: #{tpu_custom_call.1} parent=1 // pred_check
      _
    $region47: #{tpu_custom_call.1} parent=1 // pred_check_branch
      %2297 = sbr.rel (0) target = $region49
    $region48: #{tpu_custom_call.1} parent=1 // pred_region
      %2299 = dma.done [#allocation4], 2048
    $region49: #{tpu_custom_call.1} parent=1 // pred_fallthru
      _
    %2300 = vsyncpa [#allocation3], 1
    %2301 = vsyncpa [#allocation6], 1
    %2302 = vsyncpa [#allocation9], 1
    %2303 = vsyncpa [#allocation4], 1

</llo_original>
